<compile_context>
chip_gen: v5e
topology: v5e:2x2
jax: 0.10.0
libtpu: 0.0.40
codegen_flags: <defaults>
</compile_context>

<pallas_src>
import jax
import jax.numpy as jnp
from jax.experimental import pallas as pl
from jax.experimental.pallas import tpu as pltpu


def _round_up(x, m):
    return ((x + m - 1) // m) * m


# ----------------------------------------------------------------------------
# Kernel: one grid step == one decode timestep.  Weights stay resident in VMEM
# (constant index maps); h2/c2 are carried in VMEM scratch across the grid.
# ----------------------------------------------------------------------------
def _decoder_seq_kernel(x_ref, h2i_ref, c2i_ref, w_ref, wfc_ref, bfc_ref,
                        pred_ref, h2o_ref, c2o_ref,
                        xbuf, h_scr, c_scr):
    t = pl.program_id(0)
    H = h2i_ref.shape[1]

    @pl.when(t == 0)
    def _init():
        h_scr[...] = h2i_ref[...]
        c_scr[...] = c2i_ref[...]

    # Assemble the fused-matmul operand: [ h2 | weighted_attn, h1, 1, 0-pad ]
    # (h2 occupies the first 128 lanes -> both stores are lane-tile aligned).
    xbuf[:, :H] = h_scr[...].astype(xbuf.dtype)
    xbuf[:, H:] = x_ref[...]

    # Single MXU pass: gates = [h2|x|1|0] @ [W_hh ; W_ih ; b ; 0]  -> [B,4H] f32
    gates = jnp.dot(xbuf[...], w_ref[...], preferred_element_type=jnp.float32)

    i_g = jax.nn.sigmoid(gates[:, 0 * H:1 * H])
    f_g = jax.nn.sigmoid(gates[:, 1 * H:2 * H])
    g_g = jnp.tanh(gates[:, 2 * H:3 * H])
    o_g = jax.nn.sigmoid(gates[:, 3 * H:4 * H])

    c_new = f_g * c_scr[...] + i_g * g_g
    h_new = o_g * jnp.tanh(c_new)
    c_scr[...] = c_new
    h_scr[...] = h_new

    # fc (weight-normed Linear); dropout == identity at inference.
    pred_ref[...] = (
        jnp.dot(h_new.astype(wfc_ref.dtype), wfc_ref[...],
                preferred_element_type=jnp.float32)
        + bfc_ref[...]
    )

    @pl.when(t == pl.num_programs(0) - 1)
    def _finalize():
        h2o_ref[...] = h_new
        c2o_ref[...] = c_new


# ----------------------------------------------------------------------------
# One-time parameter preparation (hoisted out of the per-step path).
# ----------------------------------------------------------------------------
def prepare_params(params):
    H = params["w_hh"].shape[1]
    in_dim = params["w_ih"].shape[1] - H
    out_dim = params["fc_v"].shape[0]

    # Per-step input width: [weighted_attn, h1, 1(bias col)] rounded up to 128.
    x_width = _round_up(in_dim + H + 1, 128)
    k_pad = H + x_width

    b_lstm = params["b_ih"] + params["b_hh"]                      # [4H]
    w_x = jnp.zeros((k_pad, 4 * H), jnp.float32)
    w_x = w_x.at[:H].set(params["w_hh"].T)                        # h2 rows
    w_x = w_x.at[H:H + in_dim + H].set(params["w_ih"].T)          # [wa, h1] rows
    w_x = w_x.at[H + in_dim + H].set(b_lstm)                      # bias row (x col == 1)
    w_x = w_x.astype(jnp.bfloat16)                                # [K_pad, 4H]

    # weight_norm (dim=0): w = g * v / ||v|| (per output row).
    v = params["fc_v"]
    g = params["fc_g"]
    w_fc = (g * v / jnp.sqrt(jnp.sum(v * v, axis=1, keepdims=True)))
    w_fc = w_fc.T.astype(jnp.bfloat16)                            # [H, out_dim]
    b_fc = params["fc_b"].reshape(1, out_dim).astype(jnp.float32)

    return {"w_x": w_x, "w_fc": w_fc, "b_fc": b_fc}


# ----------------------------------------------------------------------------
# Multi-step forward: T LanguageDecoder.forward() steps fused into one kernel.
# ----------------------------------------------------------------------------
@jax.jit
def language_decoder_forward_seq(weighted_attn_seq, h1_seq, h2, c2, prepared):
    """Runs T decoder steps.  Returns (predictions [T,B,out], (h2_T, c2_T))."""
    T, B, in_dim = weighted_attn_seq.shape
    H = h2.shape[1]
    w_x, w_fc, b_fc = prepared["w_x"], prepared["w_fc"], prepared["b_fc"]
    k_pad = w_x.shape[0]
    out_dim = w_fc.shape[1]
    x_width = k_pad - H
    pad = x_width - (in_dim + H + 1)

    # Per-step input slab: [weighted_attn, h1, 1 (bias), 0-pad]  (bf16).
    x_seq = jnp.concatenate(
        [weighted_attn_seq, h1_seq,
         jnp.ones((T, B, 1), weighted_attn_seq.dtype),
         jnp.zeros((T, B, pad), weighted_attn_seq.dtype)],
        axis=-1).astype(jnp.bfloat16)                             # [T, B, x_width]

    pred_seq, h2_new, c2_new = pl.pallas_call(
        _decoder_seq_kernel,
        out_shape=(
            jax.ShapeDtypeStruct((T, B, out_dim), jnp.float32),
            jax.ShapeDtypeStruct((B, H), jnp.float32),
            jax.ShapeDtypeStruct((B, H), jnp.float32),
        ),
        grid=(T,),
        in_specs=[
            pl.BlockSpec((None, B, x_width), lambda t: (t, 0, 0)),   # per-step x
            pl.BlockSpec((B, H), lambda t: (0, 0)),                  # h2 init
            pl.BlockSpec((B, H), lambda t: (0, 0)),                  # c2 init
            pl.BlockSpec((k_pad, 4 * H), lambda t: (0, 0)),          # stacked W (resident)
            pl.BlockSpec((H, out_dim), lambda t: (0, 0)),            # fc W (resident)
            pl.BlockSpec((1, out_dim), lambda t: (0, 0)),            # fc bias
        ],
        out_specs=(
            pl.BlockSpec((None, B, out_dim), lambda t: (t, 0, 0)),   # per-step pred
            pl.BlockSpec((B, H), lambda t: (0, 0)),                  # final h2
            pl.BlockSpec((B, H), lambda t: (0, 0)),                  # final c2
        ),
        scratch_shapes=[
            pltpu.VMEM((B, k_pad), jnp.bfloat16),   # fused matmul operand
            pltpu.VMEM((B, H), jnp.float32),        # h2 carry
            pltpu.VMEM((B, H), jnp.float32),        # c2 carry
        ],
        input_output_aliases={1: 1, 2: 2},          # h2 -> h2_new, c2 -> c2_new
        compiler_params=pltpu.CompilerParams(
            dimension_semantics=("arbitrary",)),     # sequential recurrence
    )(x_seq, h2, c2, w_x, w_fc, b_fc)

    return pred_seq, (h2_new, c2_new)


def language_decoder_forward(weighted_attn, h1, h2, c2, prepared):
    """Single LanguageDecoder.forward() step (module semantics)."""
    pred_seq, (h2_new, c2_new) = language_decoder_forward_seq(
        weighted_attn[None], h1[None], h2, c2, prepared)
    return pred_seq[0], (h2_new, c2_new)


# ----------------------------------------------------------------------------
# Parameter init matching the module's __init__ shapes.
# ----------------------------------------------------------------------------
def init_params(key, in_dim, hidden_dim, out_dim, fc_bias_init=0.0):
    k1, k2, k3, k4, k5 = jax.random.split(key, 5)
    lstm_in = in_dim + hidden_dim
    k = 1.0 / jnp.sqrt(hidden_dim)
    return {
        # nn.LSTMCell(in_dim + hidden_dim, hidden_dim, bias=True)
        "w_ih": jax.random.uniform(k1, (4 * hidden_dim, lstm_in), jnp.float32, -k, k),
        "w_hh": jax.random.uniform(k2, (4 * hidden_dim, hidden_dim), jnp.float32, -k, k),
        "b_ih": jax.random.uniform(k3, (4 * hidden_dim,), jnp.float32, -k, k),
        "b_hh": jax.random.uniform(k4, (4 * hidden_dim,), jnp.float32, -k, k),
        # weight_norm(nn.Linear(hidden_dim, out_dim)): v + g; bias filled.
        "fc_v": jax.random.uniform(k5, (out_dim, hidden_dim), jnp.float32, -0.1, 0.1),
        "fc_g": jnp.ones((out_dim, 1), jnp.float32),
        "fc_b": jnp.full((out_dim,), fc_bias_init, jnp.float32),
    }


# ----------------------------------------------------------------------------
# Pure-JAX references.  cast_bf16=True mirrors the kernel's bf16 weight /
# activation casts exactly (tight check); cast_bf16=False is the plain f32
# module semantics (loose check, bf16 rounding noise only).
# ----------------------------------------------------------------------------
def _reference_multistep(wa_seq, h1_seq, h2, c2, params, cast_bf16=False):
    H = h2.shape[1]
    hp = jax.lax.Precision.HIGHEST
    rb = ((lambda a: a.astype(jnp.bfloat16).astype(jnp.float32))
          if cast_bf16 else (lambda a: a))

    w_ih = rb(params["w_ih"])
    w_hh = rb(params["w_hh"])
    b = rb((params["b_ih"] + params["b_hh"]).reshape(1, 4 * H))
    v = params["fc_v"]
    w_fc = rb(params["fc_g"] * v / jnp.sqrt(jnp.sum(v * v, axis=1, keepdims=True)))
    b_fc = params["fc_b"].reshape(1, -1)

    preds = []
    h, c = h2, c2
    for t in range(wa_seq.shape[0]):
        x = rb(jnp.concatenate([wa_seq[t], h1_seq[t]], axis=1))
        gates = (jnp.dot(x, w_ih.T, precision=hp)
                 + jnp.dot(rb(h), w_hh.T, precision=hp) + b)
        i = jax.nn.sigmoid(gates[:, 0 * H:1 * H])
        f = jax.nn.sigmoid(gates[:, 1 * H:2 * H])
        g = jnp.tanh(gates[:, 2 * H:3 * H])
        o = jax.nn.sigmoid(gates[:, 3 * H:4 * H])
        c = f * c + i * g
        h = o * jnp.tanh(c)
        preds.append(jnp.dot(rb(h), w_fc.T, precision=hp) + b_fc)
    return jnp.stack(preds), h, c


if __name__ == "__main__":
    B, IN_DIM, HIDDEN, OUT_DIM, T = 8, 64, 128, 256, 4

    key = jax.random.PRNGKey(0)
    kp, ka, kh1, kh2, kc2 = jax.random.split(key, 5)

    params = init_params(kp, IN_DIM, HIDDEN, OUT_DIM, fc_bias_init=0.0)
    prepared = prepare_params(params)          # one-time weight prep (bf16, stacked)

    wa_seq = jax.random.normal(ka, (T, B, IN_DIM), jnp.float32)   # per-step attn
    h1_seq = jax.random.normal(kh1, (T, B, HIDDEN), jnp.float32)  # per-step td_hidden h
    h2 = jax.random.normal(kh2, (B, HIDDEN), jnp.float32)         # lm_hidden h
    c2 = jax.random.normal(kc2, (B, HIDDEN), jnp.float32)         # lm_hidden c

    # --- fused multi-step decode (weights VMEM-resident across T grid steps) --
    pred_seq, (h2_n, c2_n) = language_decoder_forward_seq(wa_seq, h1_seq, h2, c2, prepared)
    jax.block_until_ready((pred_seq, h2_n, c2_n))

    # --- single-step module forward (T=1 path) -------------------------------
    pred_1, (h2_1, c2_1) = language_decoder_forward(wa_seq[0], h1_seq[0], h2, c2, prepared)
    jax.block_until_ready((pred_1, h2_1, c2_1))

    # Tight check: kernel vs a reference that mirrors the kernel's bf16 casts.
    p_rb, h_rb, c_rb = _reference_multistep(wa_seq, h1_seq, h2, c2, params, cast_bf16=True)
    assert jnp.allclose(pred_seq, p_rb, atol=3e-3, rtol=3e-3)
    assert jnp.allclose(h2_n, h_rb, atol=3e-3, rtol=3e-3)
    assert jnp.allclose(c2_n, c_rb, atol=3e-3, rtol=3e-3)

    # Loose check: kernel vs pure-f32 module semantics (bf16 weight noise only).
    p_rf, h_rf, c_rf = _reference_multistep(wa_seq, h1_seq, h2, c2, params, cast_bf16=False)
    assert jnp.allclose(pred_seq, p_rf, atol=1e-1, rtol=1e-1)
    assert jnp.allclose(h2_n, h_rf, atol=1e-1, rtol=1e-1)
    assert jnp.allclose(c2_n, c_rf, atol=1e-1, rtol=1e-1)

    # Single-step path is consistent with step 0 of the fused sequence.
    p1_rb, h1_rb, c1_rb = _reference_multistep(
        wa_seq[:1], h1_seq[:1], h2, c2, params, cast_bf16=True)
    assert jnp.allclose(pred_1, pred_seq[0], atol=1e-4, rtol=1e-4)
    assert jnp.allclose(pred_1, p1_rb[0], atol=3e-3, rtol=3e-3)
    assert jnp.allclose(h2_1, h1_rb, atol=3e-3, rtol=3e-3)
    assert jnp.allclose(c2_1, c1_rb, atol=3e-3, rtol=3e-3)

    print("KERNEL_OK")
</pallas_src>

<mosaic_0001>
module attributes {stable_mosaic.version = 11 : i64} {
  func.func @_decoder_seq_kernel(%arg0: i32, %arg1: memref<1x8x256xbf16, #tpu.memory_space<vmem>>, %arg2: memref<8x128xf32, #tpu.memory_space<vmem>>, %arg3: memref<8x128xf32, #tpu.memory_space<vmem>>, %arg4: memref<384x512xbf16, #tpu.memory_space<vmem>>, %arg5: memref<128x256xbf16, #tpu.memory_space<vmem>>, %arg6: memref<1x256xf32, #tpu.memory_space<vmem>>, %arg7: memref<1x8x256xf32, #tpu.memory_space<vmem>>, %arg8: memref<8x128xf32, #tpu.memory_space<vmem>>, %arg9: memref<8x128xf32, #tpu.memory_space<vmem>>, %arg10: memref<8x384xbf16, #tpu.memory_space<vmem>>, %arg11: memref<8x128xf32, #tpu.memory_space<vmem>>, %arg12: memref<8x128xf32, #tpu.memory_space<vmem>>) attributes {dimension_semantics = [#tpu.dimension_semantics<arbitrary>], iteration_bounds = array<i64: 4>, scalar_prefetch = 0 : i64, scratch_operands = 3 : i64, tpu.core_type = #tpu.core_type<tc>, window_params = [{transform_indices = @transform_0, window_bounds = array<i64: 1, 8, 256>}, {pipeline_mode = #tpu.pipeline_mode<synchronous>, transform_indices = @transform_1, window_bounds = array<i64: 8, 128>}, {pipeline_mode = #tpu.pipeline_mode<synchronous>, transform_indices = @transform_2, window_bounds = array<i64: 8, 128>}, {pipeline_mode = #tpu.pipeline_mode<synchronous>, transform_indices = @transform_3, window_bounds = array<i64: 384, 512>}, {pipeline_mode = #tpu.pipeline_mode<synchronous>, transform_indices = @transform_4, window_bounds = array<i64: 128, 256>}, {pipeline_mode = #tpu.pipeline_mode<synchronous>, transform_indices = @transform_5, window_bounds = array<i64: 1, 256>}, {transform_indices = @transform_6, window_bounds = array<i64: 1, 8, 256>}, {pipeline_mode = #tpu.pipeline_mode<synchronous>, transform_indices = @transform_7, window_bounds = array<i64: 8, 128>}, {pipeline_mode = #tpu.pipeline_mode<synchronous>, transform_indices = @transform_8, window_bounds = array<i64: 8, 128>}]} {
    %c0_i32 = arith.constant 0 : i32
    %0 = arith.cmpi eq, %arg0, %c0_i32 : i32
    %1 = arith.extui %0 : i1 to i32
    %c0_i32_0 = arith.constant 0 : i32
    %2 = arith.cmpi ne, %1, %c0_i32_0 : i32
    scf.if %2 {
      %c0_30 = arith.constant 0 : index
      %c0_31 = arith.constant 0 : index
      %52 = vector.load %arg2[%c0_30, %c0_31] : memref<8x128xf32, #tpu.memory_space<vmem>>, vector<8x128xf32>
      %c0_32 = arith.constant 0 : index
      %c0_33 = arith.constant 0 : index
      %53 = vector.load %arg11[%c0_32, %c0_33] : memref<8x128xf32, #tpu.memory_space<vmem>>, vector<8x128xf32>
      tpu.vector_store %arg11[%c0_32, %c0_33], %52 {strides = array<i32>} : memref<8x128xf32, #tpu.memory_space<vmem>>, vector<8x128xf32>,
      %c0_34 = arith.constant 0 : index
      %c0_35 = arith.constant 0 : index
      %54 = vector.load %arg3[%c0_34, %c0_35] : memref<8x128xf32, #tpu.memory_space<vmem>>, vector<8x128xf32>
      %c0_36 = arith.constant 0 : index
      %c0_37 = arith.constant 0 : index
      %55 = vector.load %arg12[%c0_36, %c0_37] : memref<8x128xf32, #tpu.memory_space<vmem>>, vector<8x128xf32>
      tpu.vector_store %arg12[%c0_36, %c0_37], %54 {strides = array<i32>} : memref<8x128xf32, #tpu.memory_space<vmem>>, vector<8x128xf32>,
    } else {
    }
    %c0 = arith.constant 0 : index
    %c0_1 = arith.constant 0 : index
    %3 = vector.load %arg11[%c0, %c0_1] : memref<8x128xf32, #tpu.memory_space<vmem>>, vector<8x128xf32>
    %4 = arith.truncf %3 : vector<8x128xf32> to vector<8x128xbf16>
    %c0_2 = arith.constant 0 : index
    %c0_3 = arith.constant 0 : index
    %5 = vector.load %arg10[%c0_2, %c0_3] : memref<8x384xbf16, #tpu.memory_space<vmem>>, vector<8x128xbf16>
    tpu.vector_store %arg10[%c0_2, %c0_3], %4 {strides = array<i32>} : memref<8x384xbf16, #tpu.memory_space<vmem>>, vector<8x128xbf16>,
    %c0_4 = arith.constant 0 : index
    %c0_5 = arith.constant 0 : index
    %c0_6 = arith.constant 0 : index
    %6 = vector.load %arg1[%c0_4, %c0_5, %c0_6] : memref<1x8x256xbf16, #tpu.memory_space<vmem>>, vector<1x8x256xbf16>
    %7 = vector.shape_cast %6 : vector<1x8x256xbf16> to vector<8x256xbf16>
    %c0_7 = arith.constant 0 : index
    %c128 = arith.constant 128 : index
    %8 = vector.load %arg10[%c0_7, %c128] : memref<8x384xbf16, #tpu.memory_space<vmem>>, vector<8x256xbf16>
    tpu.vector_store %arg10[%c0_7, %c128], %7 {strides = array<i32>} : memref<8x384xbf16, #tpu.memory_space<vmem>>, vector<8x256xbf16>,
    %c0_8 = arith.constant 0 : index
    %c0_9 = arith.constant 0 : index
    %9 = vector.load %arg10[%c0_8, %c0_9] : memref<8x384xbf16, #tpu.memory_space<vmem>>, vector<8x384xbf16>
    %c0_10 = arith.constant 0 : index
    %c0_11 = arith.constant 0 : index
    %10 = vector.load %arg4[%c0_10, %c0_11] : memref<384x512xbf16, #tpu.memory_space<vmem>>, vector<384x512xbf16>
    %cst = arith.constant dense<0.000000e+00> : vector<8x512xf32>
    %11 = tpu.matmul %9, %10, %cst {dimension_numbers = #tpu.dot_dimension_numbers<[1], [0], [0], [1], [0, 0, 1, 1], [], []>} : vector<8x384xbf16>, vector<384x512xbf16>, vector<8x512xf32> -> vector<8x512xf32>
    %12 = vector.extract_strided_slice %11 {offsets = [0, 0], sizes = [8, 128], strides = [1, 1]} : vector<8x512xf32> to vector<8x128xf32>
    %13 = arith.negf %12 : vector<8x128xf32>
    %14 = math.exp %13 : vector<8x128xf32>
    %cst_12 = arith.constant 1.000000e+00 : f32
    %15 = vector.broadcast %cst_12 : f32 to vector<8x128xf32>
    %16 = arith.addf %15, %14 : vector<8x128xf32>
    %17 = arith.divf %15, %16 : vector<8x128xf32>
    %18 = vector.extract_strided_slice %11 {offsets = [0, 128], sizes = [8, 128], strides = [1, 1]} : vector<8x512xf32> to vector<8x128xf32>
    %19 = arith.negf %18 : vector<8x128xf32>
    %20 = math.exp %19 : vector<8x128xf32>
    %cst_13 = arith.constant 1.000000e+00 : f32
    %21 = vector.broadcast %cst_13 : f32 to vector<8x128xf32>
    %22 = arith.addf %21, %20 : vector<8x128xf32>
    %23 = arith.divf %21, %22 : vector<8x128xf32>
    %24 = vector.extract_strided_slice %11 {offsets = [0, 256], sizes = [8, 128], strides = [1, 1]} : vector<8x512xf32> to vector<8x128xf32>
    %25 = math.tanh %24 : vector<8x128xf32>
    %26 = vector.extract_strided_slice %11 {offsets = [0, 384], sizes = [8, 128], strides = [1, 1]} : vector<8x512xf32> to vector<8x128xf32>
    %27 = arith.negf %26 : vector<8x128xf32>
    %28 = math.exp %27 : vector<8x128xf32>
    %cst_14 = arith.constant 1.000000e+00 : f32
    %29 = vector.broadcast %cst_14 : f32 to vector<8x128xf32>
    %30 = arith.addf %29, %28 : vector<8x128xf32>
    %31 = arith.divf %29, %30 : vector<8x128xf32>
    %c0_15 = arith.constant 0 : index
    %c0_16 = arith.constant 0 : index
    %32 = vector.load %arg12[%c0_15, %c0_16] : memref<8x128xf32, #tpu.memory_space<vmem>>, vector<8x128xf32>
    %33 = arith.mulf %23, %32 : vector<8x128xf32>
    %34 = arith.mulf %17, %25 : vector<8x128xf32>
    %35 = arith.addf %33, %34 : vector<8x128xf32>
    %36 = math.tanh %35 : vector<8x128xf32>
    %37 = arith.mulf %31, %36 : vector<8x128xf32>
    %c0_17 = arith.constant 0 : index
    %c0_18 = arith.constant 0 : index
    %38 = vector.load %arg12[%c0_17, %c0_18] : memref<8x128xf32, #tpu.memory_space<vmem>>, vector<8x128xf32>
    tpu.vector_store %arg12[%c0_17, %c0_18], %35 {strides = array<i32>} : memref<8x128xf32, #tpu.memory_space<vmem>>, vector<8x128xf32>,
    %c0_19 = arith.constant 0 : index
    %c0_20 = arith.constant 0 : index
    %39 = vector.load %arg11[%c0_19, %c0_20] : memref<8x128xf32, #tpu.memory_space<vmem>>, vector<8x128xf32>
    tpu.vector_store %arg11[%c0_19, %c0_20], %37 {strides = array<i32>} : memref<8x128xf32, #tpu.memory_space<vmem>>, vector<8x128xf32>,
    %40 = arith.truncf %37 : vector<8x128xf32> to vector<8x128xbf16>
    %c0_21 = arith.constant 0 : index
    %c0_22 = arith.constant 0 : index
    %41 = vector.load %arg5[%c0_21, %c0_22] : memref<128x256xbf16, #tpu.memory_space<vmem>>, vector<128x256xbf16>
    %cst_23 = arith.constant dense<0.000000e+00> : vector<8x256xf32>
    %42 = tpu.matmul %40, %41, %cst_23 {dimension_numbers = #tpu.dot_dimension_numbers<[1], [0], [0], [1], [0, 0, 1, 1], [], []>} : vector<8x128xbf16>, vector<128x256xbf16>, vector<8x256xf32> -> vector<8x256xf32>
    %c0_24 = arith.constant 0 : index
    %c0_25 = arith.constant 0 : index
    %43 = vector.load %arg6[%c0_24, %c0_25] : memref<1x256xf32, #tpu.memory_space<vmem>>, vector<1x256xf32>
    %44 = vector.broadcast %43 : vector<1x256xf32> to vector<8x256xf32>
    %45 = arith.addf %42, %44 : vector<8x256xf32>
    %c0_26 = arith.constant 0 : index
    %c0_27 = arith.constant 0 : index
    %c0_28 = arith.constant 0 : index
    %46 = vector.load %arg7[%c0_26, %c0_27, %c0_28] : memref<1x8x256xf32, #tpu.memory_space<vmem>>, vector<1x8x256xf32>
    %47 = vector.shape_cast %46 : vector<1x8x256xf32> to vector<8x256xf32>
    %48 = vector.shape_cast %45 : vector<8x256xf32> to vector<1x8x256xf32>
    tpu.vector_store %arg7[%c0_26, %c0_27, %c0_28], %48 {strides = array<i32>} : memref<1x8x256xf32, #tpu.memory_space<vmem>>, vector<1x8x256xf32>,
    %c3_i32 = arith.constant 3 : i32
    %49 = arith.cmpi eq, %arg0, %c3_i32 : i32
    %50 = arith.extui %49 : i1 to i32
    %c0_i32_29 = arith.constant 0 : i32
    %51 = arith.cmpi ne, %50, %c0_i32_29 : i32
    scf.if %51 {
      %c0_30 = arith.constant 0 : index
      %c0_31 = arith.constant 0 : index
      %52 = vector.load %arg8[%c0_30, %c0_31] : memref<8x128xf32, #tpu.memory_space<vmem>>, vector<8x128xf32>
      tpu.vector_store %arg8[%c0_30, %c0_31], %37 {strides = array<i32>} : memref<8x128xf32, #tpu.memory_space<vmem>>, vector<8x128xf32>,
      %c0_32 = arith.constant 0 : index
      %c0_33 = arith.constant 0 : index
      %53 = vector.load %arg9[%c0_32, %c0_33] : memref<8x128xf32, #tpu.memory_space<vmem>>, vector<8x128xf32>
      tpu.vector_store %arg9[%c0_32, %c0_33], %35 {strides = array<i32>} : memref<8x128xf32, #tpu.memory_space<vmem>>, vector<8x128xf32>,
    } else {
    }
    return
  }
  func.func @transform_0(%arg0: i32) -> (i32, i32, i32) {
    %c0_i32 = arith.constant 0 : i32
    %c0_i32_0 = arith.constant 0 : i32
    %c0_i32_1 = arith.constant 0 : i32
    return %arg0, %c0_i32, %c0_i32_0 : i32, i32, i32
  }
  func.func @transform_1(%arg0: i32) -> (i32, i32) {
    %c0_i32 = arith.constant 0 : i32
    %c0_i32_0 = arith.constant 0 : i32
    %c0_i32_1 = arith.constant 0 : i32
    return %c0_i32, %c0_i32_0 : i32, i32
  }
  func.func @transform_2(%arg0: i32) -> (i32, i32) {
    %c0_i32 = arith.constant 0 : i32
    %c0_i32_0 = arith.constant 0 : i32
    %c0_i32_1 = arith.constant 0 : i32
    return %c0_i32, %c0_i32_0 : i32, i32
  }
  func.func @transform_3(%arg0: i32) -> (i32, i32) {
    %c0_i32 = arith.constant 0 : i32
    %c0_i32_0 = arith.constant 0 : i32
    %c0_i32_1 = arith.constant 0 : i32
    return %c0_i32, %c0_i32_0 : i32, i32
  }
  func.func @transform_4(%arg0: i32) -> (i32, i32) {
    %c0_i32 = arith.constant 0 : i32
    %c0_i32_0 = arith.constant 0 : i32
    %c0_i32_1 = arith.constant 0 : i32
    return %c0_i32, %c0_i32_0 : i32, i32
  }
  func.func @transform_5(%arg0: i32) -> (i32, i32) {
    %c0_i32 = arith.constant 0 : i32
    %c0_i32_0 = arith.constant 0 : i32
    %c0_i32_1 = arith.constant 0 : i32
    return %c0_i32, %c0_i32_0 : i32, i32
  }
  func.func @transform_6(%arg0: i32) -> (i32, i32, i32) {
    %c0_i32 = arith.constant 0 : i32
    %c0_i32_0 = arith.constant 0 : i32
    %c0_i32_1 = arith.constant 0 : i32
    return %arg0, %c0_i32, %c0_i32_0 : i32, i32, i32
  }
  func.func @transform_7(%arg0: i32) -> (i32, i32) {
    %c0_i32 = arith.constant 0 : i32
    %c0_i32_0 = arith.constant 0 : i32
    %c0_i32_1 = arith.constant 0 : i32
    return %c0_i32, %c0_i32_0 : i32, i32
  }
  func.func @transform_8(%arg0: i32) -> (i32, i32) {
    %c0_i32 = arith.constant 0 : i32
    %c0_i32_0 = arith.constant 0 : i32
    %c0_i32_1 = arith.constant 0 : i32
    return %c0_i32, %c0_i32_0 : i32, i32
  }
}

</mosaic_0001>

<llo_original>
// kernel: language_decoder_forward_seq.1
$region0: #{language_decoder_forward_seq.1}
  #allocation0 [shape = 'u32[]', space=smem, size = 0x4, offset = 0x4, fixed_abs, tag = 'smem constant byte address 0x4 - core index']
  #allocation1 [shape = 'u32[72,128]{1,0:T(1,128)}', space=vmem, size = 0x9000, scoped, tag = 'internal scratch']
  #allocation2 [shape = 'bf16[8,384]{1,0:T(8,128)(2,1)}', space=vmem, size = 0x1800, scoped, tag = 'scratch operand']
  #allocation3 [shape = 'f32[8,128]{1,0:T(8,128)}', space=vmem, size = 0x1000, scoped, tag = 'scratch operand']
  #allocation4 [shape = 'f32[8,128]{1,0:T(8,128)}', space=vmem, size = 0x1000, scoped, tag = 'scratch operand']
  %s0 = inlined_call_operand.vmem [shape: bf16[4,8,256], index: 0, kind: input, shape index: {}]
  %s1 = inlined_call_operand.hbm [shape: f32[8,128], index: 1, kind: input, shape index: {}, may-alias: {1,7}]
  %s2 = inlined_call_operand.hbm [shape: f32[8,128], index: 2, kind: input, shape index: {}, may-alias: {2,8}]
  %s3 = inlined_call_operand.hbm [shape: bf16[384,512], index: 3, kind: input, shape index: {}]
  %s4 = inlined_call_operand.vmem [shape: bf16[128,256], index: 4, kind: input, shape index: {}]
  %s5 = inlined_call_operand.vmem [shape: f32[1,256], index: 5, kind: input, shape index: {}]
  %s6 = inlined_call_operand.hbm [shape: f32[4,8,256], index: 6, kind: output, shape index: {0}]
  %s7 = inlined_call_operand.hbm [shape: f32[8,128], index: 7, kind: output, shape index: {1}, may-alias: {1,7}]
  %s8 = inlined_call_operand.hbm [shape: f32[8,128], index: 8, kind: output, shape index: {2}, may-alias: {2,8}]
  %9 = xla_tuple %s6, %s7, %s8
  %s10 = sld [smem:[#allocation0]]
  $region93: #{language_decoder_forward_seq.1} parent=0
    _
  %s12 = ssub.s32 1, %s10
  %s13 = scalar_select 0, %s12, %s10
  $region1: #{language_decoder_forward_seq.1} parent=0
    #allocation5 [shape = 'u8[4096]{0}', space=vmem, size = 0x1000, scoped, tag = 'input window, operand 1, single buffered']
    #allocation6 [shape = 's32[2]{0}', space=sflag, size = 0x8, scoped, tag = 'scoped memory for language_decoder_forward_seq.1']
    #allocation7 [shape = 's32[2]{0}', space=sflag, size = 0x8, scoped, tag = 'scoped memory for language_decoder_forward_seq.1']
    #allocation8 [shape = 'u8[4096]{0}', space=vmem, size = 0x1000, scoped, tag = 'input window, operand 2, single buffered']
    #allocation9 [shape = 's32[1]{0}', space=sflag, size = 0x4, scoped, tag = 'scoped memory for language_decoder_forward_seq.1']
    #allocation10 [shape = 'u8[393216]{0}', space=vmem, size = 0x60000, scoped, tag = 'input window, operand 3, single buffered']
    #allocation11 [shape = 'u8[16384]{0}', space=vmem, size = 0x4000, scoped, tag = 'output window, operand 0']
    #allocation12 [shape = 'u8[4096]{0}', space=vmem, size = 0x1000, scoped, tag = 'output window, operand 1, single buffered']
    #allocation13 [shape = 's32[1]{0}', space=sflag, size = 0x4, scoped, tag = 'scoped memory for language_decoder_forward_seq.1']
    #allocation14 [shape = 'u8[4096]{0}', space=vmem, size = 0x1000, scoped, tag = 'output window, operand 2, single buffered']
    %14 = vsyncpa [#allocation6], 0
    %15 = vsyncpa [#allocation9], 0
    %16 = vsyncpa [#allocation7], 0
    %s17 = scalar_lea.sflag [#allocation7], 1
    %18 = vsyncpa %s17, 0
    %19 = vsyncpa [#allocation13], 0
    loop: start=0, step=1, limit=6
    $region2: #{language_decoder_forward_seq.1} parent=1 // loop_pre_header
      _
    $region3: #{language_decoder_forward_seq.1} parent=1 // loop_header
      %s21 = sphi 0, %s25
      %p22 = scmp.ge.s32.totalorder %s21, 6
      %s31 = sphi 0, %s33
      %s34 = sphi 0, %s31
      %s35 = sphi 0, %s34
      %s51 = sphi 0, %s35
      %s55 = sphi 0, %s55
      %s57 = sphi 0, %s55
      %s58 = sphi 0, %s57
      %s72 = sphi 0, %s58
      %s76 = sphi 0, %s76
      %s78 = sphi 0, %s76
      %s79 = sphi 0, %s78
      %s93 = sphi 0, %s79
      %s97 = sphi 0, %s97
      %s99 = sphi 0, %s97
      %s100 = sphi 0, %s99
      %s114 = sphi 0, %s100
      %s118 = sphi 0, %s118
      %s120 = sphi 0, %s118
      %s121 = sphi 0, %s120
      %s135 = sphi 0, %s121
      %s139 = sphi 0, %s139
      %s141 = sphi 0, %s139
      %s142 = sphi 0, %s141
      %s156 = sphi 0, %s142
      %s162 = sphi 0, %s164
      %s165 = sphi 0, %s162
      %s166 = sphi 0, %s165
      %s182 = sphi 0, %s166
      %s186 = sphi 0, %s186
      %s188 = sphi 0, %s186
      %s189 = sphi 0, %s188
      %s203 = sphi 0, %s189
      %s207 = sphi 0, %s207
      %s209 = sphi 0, %s207
      %s210 = sphi 0, %s209
      %s224 = sphi 0, %s210
    $region4: #{language_decoder_forward_seq.1} parent=1 // loop_header_branch
      %24 = sbr.rel (%p22) target = $region8
    $region5: #{language_decoder_forward_seq.1} parent=1 // loop_body
      %s26 = ssub.s32 %s21, 1
      %s27 = ssub.s32 %s21, 2
      %s28 = sadd.s32 %s21, 1
      %s29 = ssub.s32 %s21, %s28
      %p30 = scmp.eq.s32.totalorder %s29, 0
      %s32 = sadd.s32 %s31, 1
      %s33 = scalar_select %p30, %s31, %s32
      %p36 = pneg %p30
      %p37 = scmp.eq.s32.totalorder %s21, 3
      %p38 = por %p36, %p37
      %p39 = scmp.ne.s32.totalorder %s31, %s34
      %p40 = scmp.eq.s32.totalorder %s21, 0
      %p41 = por %p39, %p40
      %p42 = scmp.ne.s32.totalorder %s31, %s34
      %p43 = scmp.eq.s32.totalorder %s26, 3
      %p44 = por %p42, %p43
      %p45 = scmp.ne.s32.totalorder %s34, %s35
      %p46 = scmp.eq.s32.totalorder %s26, 0
      %p47 = por %p45, %p46
      %p48 = scmp.ne.s32.totalorder %s34, %s35
      %p49 = scmp.eq.s32.totalorder %s27, 3
      %p50 = por %p48, %p49
      %p52 = scmp.ne.s32.totalorder %s35, %s51
      %p53 = scmp.eq.s32.totalorder %s27, 0
      %p54 = por %p52, %p53
      %s56 = sadd.s32 %s55, 1
      %p59 = scmp.eq.s32.totalorder %s21, 3
      %p60 = scmp.ne.s32.totalorder %s55, %s57
      %p61 = scmp.eq.s32.totalorder %s21, 0
      %p62 = por %p60, %p61
      %p63 = scmp.ne.s32.totalorder %s55, %s57
      %p64 = scmp.eq.s32.totalorder %s26, 3
      %p65 = por %p63, %p64
      %p66 = scmp.ne.s32.totalorder %s57, %s58
      %p67 = scmp.eq.s32.totalorder %s26, 0
      %p68 = por %p66, %p67
      %p69 = scmp.ne.s32.totalorder %s57, %s58
      %p70 = scmp.eq.s32.totalorder %s27, 3
      %p71 = por %p69, %p70
      %p73 = scmp.ne.s32.totalorder %s58, %s72
      %p74 = scmp.eq.s32.totalorder %s27, 0
      %p75 = por %p73, %p74
      %s77 = sadd.s32 %s76, 1
      %p80 = scmp.eq.s32.totalorder %s21, 3
      %p81 = scmp.ne.s32.totalorder %s76, %s78
      %p82 = scmp.eq.s32.totalorder %s21, 0
      %p83 = por %p81, %p82
      %p84 = scmp.ne.s32.totalorder %s76, %s78
      %p85 = scmp.eq.s32.totalorder %s26, 3
      %p86 = por %p84, %p85
      %p87 = scmp.ne.s32.totalorder %s78, %s79
      %p88 = scmp.eq.s32.totalorder %s26, 0
      %p89 = por %p87, %p88
      %p90 = scmp.ne.s32.totalorder %s78, %s79
      %p91 = scmp.eq.s32.totalorder %s27, 3
      %p92 = por %p90, %p91
      %p94 = scmp.ne.s32.totalorder %s79, %s93
      %p95 = scmp.eq.s32.totalorder %s27, 0
      %p96 = por %p94, %p95
      %s98 = sadd.s32 %s97, 1
      %p101 = scmp.eq.s32.totalorder %s21, 3
      %p102 = scmp.ne.s32.totalorder %s97, %s99
      %p103 = scmp.eq.s32.totalorder %s21, 0
      %p104 = por %p102, %p103
      %p105 = scmp.ne.s32.totalorder %s97, %s99
      %p106 = scmp.eq.s32.totalorder %s26, 3
      %p107 = por %p105, %p106
      %p108 = scmp.ne.s32.totalorder %s99, %s100
      %p109 = scmp.eq.s32.totalorder %s26, 0
      %p110 = por %p108, %p109
      %p111 = scmp.ne.s32.totalorder %s99, %s100
      %p112 = scmp.eq.s32.totalorder %s27, 3
      %p113 = por %p111, %p112
      %p115 = scmp.ne.s32.totalorder %s100, %s114
      %p116 = scmp.eq.s32.totalorder %s27, 0
      %p117 = por %p115, %p116
      %s119 = sadd.s32 %s118, 1
      %p122 = scmp.eq.s32.totalorder %s21, 3
      %p123 = scmp.ne.s32.totalorder %s118, %s120
      %p124 = scmp.eq.s32.totalorder %s21, 0
      %p125 = por %p123, %p124
      %p126 = scmp.ne.s32.totalorder %s118, %s120
      %p127 = scmp.eq.s32.totalorder %s26, 3
      %p128 = por %p126, %p127
      %p129 = scmp.ne.s32.totalorder %s120, %s121
      %p130 = scmp.eq.s32.totalorder %s26, 0
      %p131 = por %p129, %p130
      %p132 = scmp.ne.s32.totalorder %s120, %s121
      %p133 = scmp.eq.s32.totalorder %s27, 3
      %p134 = por %p132, %p133
      %p136 = scmp.ne.s32.totalorder %s121, %s135
      %p137 = scmp.eq.s32.totalorder %s27, 0
      %p138 = por %p136, %p137
      %s140 = sadd.s32 %s139, 1
      %p143 = scmp.eq.s32.totalorder %s21, 3
      %p144 = scmp.ne.s32.totalorder %s139, %s141
      %p145 = scmp.eq.s32.totalorder %s21, 0
      %p146 = por %p144, %p145
      %p147 = scmp.ne.s32.totalorder %s139, %s141
      %p148 = scmp.eq.s32.totalorder %s26, 3
      %p149 = por %p147, %p148
      %p150 = scmp.ne.s32.totalorder %s141, %s142
      %p151 = scmp.eq.s32.totalorder %s26, 0
      %p152 = por %p150, %p151
      %p153 = scmp.ne.s32.totalorder %s141, %s142
      %p154 = scmp.eq.s32.totalorder %s27, 3
      %p155 = por %p153, %p154
      %p157 = scmp.ne.s32.totalorder %s142, %s156
      %p158 = scmp.eq.s32.totalorder %s27, 0
      %p159 = por %p157, %p158
      %s160 = ssub.s32 %s21, %s28
      %p161 = scmp.eq.s32.totalorder %s160, 0
      %s163 = sadd.s32 %s162, 1
      %s164 = scalar_select %p161, %s162, %s163
      %p167 = pneg %p161
      %p168 = scmp.eq.s32.totalorder %s21, 3
      %p169 = por %p167, %p168
      %p170 = scmp.ne.s32.totalorder %s162, %s165
      %p171 = scmp.eq.s32.totalorder %s21, 0
      %p172 = por %p170, %p171
      %p173 = scmp.ne.s32.totalorder %s162, %s165
      %p174 = scmp.eq.s32.totalorder %s26, 3
      %p175 = por %p173, %p174
      %p176 = scmp.ne.s32.totalorder %s165, %s166
      %p177 = scmp.eq.s32.totalorder %s26, 0
      %p178 = por %p176, %p177
      %p179 = scmp.ne.s32.totalorder %s165, %s166
      %p180 = scmp.eq.s32.totalorder %s27, 3
      %p181 = por %p179, %p180
      %p183 = scmp.ne.s32.totalorder %s166, %s182
      %p184 = scmp.eq.s32.totalorder %s27, 0
      %p185 = por %p183, %p184
      %s187 = sadd.s32 %s186, 1
      %p190 = scmp.eq.s32.totalorder %s21, 3
      %p191 = scmp.ne.s32.totalorder %s186, %s188
      %p192 = scmp.eq.s32.totalorder %s21, 0
      %p193 = por %p191, %p192
      %p194 = scmp.ne.s32.totalorder %s186, %s188
      %p195 = scmp.eq.s32.totalorder %s26, 3
      %p196 = por %p194, %p195
      %p197 = scmp.ne.s32.totalorder %s188, %s189
      %p198 = scmp.eq.s32.totalorder %s26, 0
      %p199 = por %p197, %p198
      %p200 = scmp.ne.s32.totalorder %s188, %s189
      %p201 = scmp.eq.s32.totalorder %s27, 3
      %p202 = por %p200, %p201
      %p204 = scmp.ne.s32.totalorder %s189, %s203
      %p205 = scmp.eq.s32.totalorder %s27, 0
      %p206 = por %p204, %p205
      %s208 = sadd.s32 %s207, 1
      %p211 = scmp.eq.s32.totalorder %s21, 3
      %p212 = scmp.ne.s32.totalorder %s207, %s209
      %p213 = scmp.eq.s32.totalorder %s21, 0
      %p214 = por %p212, %p213
      %p215 = scmp.ne.s32.totalorder %s207, %s209
      %p216 = scmp.eq.s32.totalorder %s26, 3
      %p217 = por %p215, %p216
      %p218 = scmp.ne.s32.totalorder %s209, %s210
      %p219 = scmp.eq.s32.totalorder %s26, 0
      %p220 = por %p218, %p219
      %p221 = scmp.ne.s32.totalorder %s209, %s210
      %p222 = scmp.eq.s32.totalorder %s27, 3
      %p223 = por %p221, %p222
      %p225 = scmp.ne.s32.totalorder %s210, %s224
      %p226 = scmp.eq.s32.totalorder %s27, 0
      %p227 = por %p225, %p226
      %p228 = scmp.le.s32.totalorder 1, %s21
      %p229 = scmp.lt.s32.totalorder %s21, 5
      %p230 = pnand %p228, %p229
      %p231 = pneg %p230
      // Predicated region
      $region9: #{language_decoder_forward_seq.1} parent=5 // pred_check
        _
      $region10: #{language_decoder_forward_seq.1} parent=5 // pred_check_branch
        %233 = sbr.rel (%p230) target = $region12
      $region11: #{language_decoder_forward_seq.1} parent=5 // pred_region
        %s234 = ssub.s32 %s21, 1
        // Predicated region
        $region13: #{language_decoder_forward_seq.1} parent=11 // pred_check
          %p235 = pneg %p68
        $region14: #{language_decoder_forward_seq.1} parent=11 // pred_check_branch
          %237 = sbr.rel (%p235) target = $region16
        $region15: #{language_decoder_forward_seq.1} parent=11 // pred_region
          %239 = vsyncadd [#allocation6], 0
          %s241 = sshll.u32 %s1, 4
          %s242 = int_to_ptr.hbm [resolvable:$true] %s241
          %s243 = sshll.u32 [#allocation5], 4
          %s244 = int_to_ptr.vmem [resolvable:$true] %s243
          %246 = dma.hbm_to_vmem [thread:$0]  %s242, 128, %s244, [#allocation6]
        $region16: #{language_decoder_forward_seq.1} parent=11 // pred_fallthru
          _
        // Predicated region
        $region17: #{language_decoder_forward_seq.1} parent=11 // pred_check
          %p247 = pneg %p89
        $region18: #{language_decoder_forward_seq.1} parent=11 // pred_check_branch
          %249 = sbr.rel (%p247) target = $region20
        $region19: #{language_decoder_forward_seq.1} parent=11 // pred_region
          %251 = vsyncadd [#allocation9], 0
          %s253 = sshll.u32 %s2, 4
          %s254 = int_to_ptr.hbm [resolvable:$true] %s253
          %s255 = sshll.u32 [#allocation8], 4
          %s256 = int_to_ptr.vmem [resolvable:$true] %s255
          %258 = dma.hbm_to_vmem [thread:$0]  %s254, 128, %s256, [#allocation9]
        $region20: #{language_decoder_forward_seq.1} parent=11 // pred_fallthru
          _
        // Predicated region
        $region21: #{language_decoder_forward_seq.1} parent=11 // pred_check
          %p259 = pneg %p110
        $region22: #{language_decoder_forward_seq.1} parent=11 // pred_check_branch
          %261 = sbr.rel (%p259) target = $region24
        $region23: #{language_decoder_forward_seq.1} parent=11 // pred_region
          %263 = vsyncadd [#allocation9], 0
          %s264 = sshll.u32 %s3, 4
          %s265 = int_to_ptr.hbm [resolvable:$true] %s264
          %s266 = sshll.u32 [#allocation10], 4
          %s267 = int_to_ptr.vmem [resolvable:$true] %s266
          %272 = dma.hbm_to_vmem [thread:$0]  %s265, 12288, %s267, [#allocation9], 256, 256, 16
        $region24: #{language_decoder_forward_seq.1} parent=11 // pred_fallthru
          _
        // Predicated region
        $region25: #{language_decoder_forward_seq.1} parent=11 // pred_check
          %p273 = pneg %p131
        $region26: #{language_decoder_forward_seq.1} parent=11 // pred_check_branch
          %275 = sbr.rel (%p273) target = $region28
        $region27: #{language_decoder_forward_seq.1} parent=11 // pred_region
          _
        $region28: #{language_decoder_forward_seq.1} parent=11 // pred_fallthru
          _
        // Predicated region
        $region29: #{language_decoder_forward_seq.1} parent=11 // pred_check
          %p276 = pneg %p152
        $region30: #{language_decoder_forward_seq.1} parent=11 // pred_check_branch
          %278 = sbr.rel (%p276) target = $region32
        $region31: #{language_decoder_forward_seq.1} parent=11 // pred_region
          _
        $region32: #{language_decoder_forward_seq.1} parent=11 // pred_fallthru
          _
      $region12: #{language_decoder_forward_seq.1} parent=5 // pred_fallthru
        _
      %p279 = scmp.lt.s32.totalorder %s21, 4
      // Predicated region
      $region33: #{language_decoder_forward_seq.1} parent=5 // pred_check
        %p280 = pneg %p279
      $region34: #{language_decoder_forward_seq.1} parent=5 // pred_check_branch
        %282 = sbr.rel (%p280) target = $region36
      $region35: #{language_decoder_forward_seq.1} parent=5 // pred_region
        // Predicated region
        $region37: #{language_decoder_forward_seq.1} parent=35 // pred_check
          %p283 = pneg %p41
        $region38: #{language_decoder_forward_seq.1} parent=35 // pred_check_branch
          %285 = sbr.rel (%p283) target = $region40
        $region39: #{language_decoder_forward_seq.1} parent=35 // pred_region
          %p286 = scmp.lt.s32.totalorder %s21, 3
          %s287 = scalar_select %p286, %s21, 3
          %s288 = smul.addr %s287, 2
          %s289 = smul.addr %s288, 4
          %s290 = scalar_lea.vmem %s0, %s289
        $region40: #{language_decoder_forward_seq.1} parent=35 // pred_fallthru
          _
      $region36: #{language_decoder_forward_seq.1} parent=5 // pred_fallthru
        _
      %p291 = scmp.le.s32.totalorder 1, %s21
      %p292 = scmp.lt.s32.totalorder %s21, 5
      %p293 = pnand %p291, %p292
      %p294 = pneg %p293
      // Predicated region
      $region41: #{language_decoder_forward_seq.1} parent=5 // pred_check
        _
      $region42: #{language_decoder_forward_seq.1} parent=5 // pred_check_branch
        %296 = sbr.rel (%p293) target = $region44
      $region43: #{language_decoder_forward_seq.1} parent=5 // pred_region
        %s297 = ssub.s32 %s21, 1
        // Predicated region
        $region45: #{language_decoder_forward_seq.1} parent=43 // pred_check
          %p298 = pneg %p68
        $region46: #{language_decoder_forward_seq.1} parent=43 // pred_check_branch
          %300 = sbr.rel (%p298) target = $region48
        $region47: #{language_decoder_forward_seq.1} parent=43 // pred_region
          %302 = dma.done [#allocation6], 128
        $region48: #{language_decoder_forward_seq.1} parent=43 // pred_fallthru
          _
        // Predicated region
        $region49: #{language_decoder_forward_seq.1} parent=43 // pred_check
          %p303 = pneg %p89
        $region50: #{language_decoder_forward_seq.1} parent=43 // pred_check_branch
          %305 = sbr.rel (%p303) target = $region52
        $region51: #{language_decoder_forward_seq.1} parent=43 // pred_region
          %307 = dma.done [#allocation9], 128
        $region52: #{language_decoder_forward_seq.1} parent=43 // pred_fallthru
          _
        // Predicated region
        $region53: #{language_decoder_forward_seq.1} parent=43 // pred_check
          %p308 = pneg %p110
        $region54: #{language_decoder_forward_seq.1} parent=43 // pred_check_branch
          %310 = sbr.rel (%p308) target = $region56
        $region55: #{language_decoder_forward_seq.1} parent=43 // pred_region
          %312 = dma.done [#allocation9], 12288
        $region56: #{language_decoder_forward_seq.1} parent=43 // pred_fallthru
          _
        %p313 = scmp.lt.s32.totalorder %s26, 3
        %s314 = scalar_select %p313, %s26, 3
        %s315 = smul.addr %s314, 2
        %s316 = smul.addr %s315, 4
        %s317 = scalar_lea.vmem %s0, %s316
        %p318 = pneg %p47
        %p319 = pneg %p44
        %p320 = pneg %p68
        %p321 = pneg %p65
        %p322 = pneg %p89
        %p323 = pneg %p86
        %p324 = pneg %p110
        %p325 = pneg %p107
        %p326 = pneg %p131
        %p327 = pneg %p128
        %p328 = pneg %p152
        %p329 = pneg %p149
        %p330 = pneg %p178
        %p331 = pneg %p175
        %s332 = sand.u32 %s165, 1
        %s333 = scalar_lea.sflag [#allocation7], %s332
        %s334 = sand.u32 %s165, 1
        %s335 = smul.addr %s334, 16
        %s336 = scalar_lea.vmem [#allocation11], %s335
        %p337 = pneg %p199
        %p338 = pneg %p196
        %p339 = pneg %p220
        %p340 = pneg %p217
        %p341 = scmp.lt.s32.totalorder %s26, 3
        %s342 = scalar_select %p341, %s26, 3
        %s343 = smul.addr %s342, 2
        %s344 = smul.addr %s343, 4
        %s345 = scalar_lea.vmem %s0, %s344
        %p346 = scmp.eq.s32.totalorder %s26, 0
        // Predicated region
        $region57: #{language_decoder_forward_seq.1} parent=43 // pred_check
          %p347 = pneg %p346
        $region58: #{language_decoder_forward_seq.1} parent=43 // pred_check_branch
          %349 = sbr.rel (%p347) target = $region60
        $region59: #{language_decoder_forward_seq.1} parent=43 // pred_region
          %v350 = vld [vmem:[#allocation5] sm:$0xff]
          %351 = vst [vmem:[#allocation3] sm:$0xff] %v350
          %v352 = vld [vmem:[#allocation8] sm:$0xff]
          %353 = vst [vmem:[#allocation4] sm:$0xff] %v352
        $region60: #{language_decoder_forward_seq.1} parent=43 // pred_fallthru
          _
        %v354 = vld [vmem:[#allocation3] sm:$0xff]
        %v355 = vpack.c.bf16 %v354, %v354
        %356 = vst [vmem:[#allocation2] sm:$0xf] %v355
        %v357 = vld [vmem:[%s345] sm:$0xff]
        %358 = vst [vmem:[#allocation2 + $0x4] sm:$0xff] %v357
        %v359 = vld [vmem:[#allocation2] sm:$0xff]
        %v360 = vld [vmem:[#allocation2 + $0x8] sm:$0xf]
        %v361 = vld [vmem:[#allocation10] sm:$0xff]
        %v362 = vld [vmem:[#allocation10 + $0x8] sm:$0xff]
        %v363 = vld [vmem:[#allocation10 + $0x10] sm:$0xff]
        %v364 = vld [vmem:[#allocation10 + $0x18] sm:$0xff]
        %v365 = vld [vmem:[#allocation10 + $0x20] sm:$0xff]
        %v366 = vld [vmem:[#allocation10 + $0x28] sm:$0xff]
        %v367 = vld [vmem:[#allocation10 + $0x30] sm:$0xff]
        %v368 = vld [vmem:[#allocation10 + $0x38] sm:$0xff]
        %v369 = vld [vmem:[#allocation10 + $0x40] sm:$0xff]
        %v370 = vld [vmem:[#allocation10 + $0x48] sm:$0xff]
        %v371 = vld [vmem:[#allocation10 + $0x50] sm:$0xff]
        %v372 = vld [vmem:[#allocation10 + $0x58] sm:$0xff]
        %v373 = vld [vmem:[#allocation10 + $0x60] sm:$0xff]
        %v374 = vld [vmem:[#allocation10 + $0x68] sm:$0xff]
        %v375 = vld [vmem:[#allocation10 + $0x70] sm:$0xff]
        %v376 = vld [vmem:[#allocation10 + $0x78] sm:$0xff]
        %v377 = vld [vmem:[#allocation10 + $0x80] sm:$0xff]
        %v378 = vld [vmem:[#allocation10 + $0x88] sm:$0xff]
        %v379 = vld [vmem:[#allocation10 + $0x90] sm:$0xff]
        %v380 = vld [vmem:[#allocation10 + $0x98] sm:$0xff]
        %v381 = vld [vmem:[#allocation10 + $0xa0] sm:$0xff]
        %v382 = vld [vmem:[#allocation10 + $0xa8] sm:$0xff]
        %v383 = vld [vmem:[#allocation10 + $0xb0] sm:$0xff]
        %v384 = vld [vmem:[#allocation10 + $0xb8] sm:$0xff]
        %v385 = vld [vmem:[#allocation10 + $0xc0] sm:$0xff]
        %v386 = vld [vmem:[#allocation10 + $0xc8] sm:$0xff]
        %v387 = vld [vmem:[#allocation10 + $0xd0] sm:$0xff]
        %v388 = vld [vmem:[#allocation10 + $0xd8] sm:$0xff]
        %v389 = vld [vmem:[#allocation10 + $0xe0] sm:$0xff]
        %v390 = vld [vmem:[#allocation10 + $0xe8] sm:$0xff]
        %v391 = vld [vmem:[#allocation10 + $0xf0] sm:$0xff]
        %v392 = vld [vmem:[#allocation10 + $0xf8] sm:$0xff]
        %v393 = vld [vmem:[#allocation10 + $0x100] sm:$0xff]
        %v394 = vld [vmem:[#allocation10 + $0x108] sm:$0xff]
        %v395 = vld [vmem:[#allocation10 + $0x110] sm:$0xff]
        %v396 = vld [vmem:[#allocation10 + $0x118] sm:$0xff]
        %v397 = vld [vmem:[#allocation10 + $0x120] sm:$0xff]
        %v398 = vld [vmem:[#allocation10 + $0x128] sm:$0xff]
        %v399 = vld [vmem:[#allocation10 + $0x130] sm:$0xff]
        %v400 = vld [vmem:[#allocation10 + $0x138] sm:$0xff]
        %v401 = vld [vmem:[#allocation10 + $0x140] sm:$0xff]
        %v402 = vld [vmem:[#allocation10 + $0x148] sm:$0xff]
        %v403 = vld [vmem:[#allocation10 + $0x150] sm:$0xff]
        %v404 = vld [vmem:[#allocation10 + $0x158] sm:$0xff]
        %v405 = vld [vmem:[#allocation10 + $0x160] sm:$0xff]
        %v406 = vld [vmem:[#allocation10 + $0x168] sm:$0xff]
        %v407 = vld [vmem:[#allocation10 + $0x170] sm:$0xff]
        %v408 = vld [vmem:[#allocation10 + $0x178] sm:$0xff]
        %v409 = vld [vmem:[#allocation10 + $0x180] sm:$0xff]
        %v410 = vld [vmem:[#allocation10 + $0x188] sm:$0xff]
        %v411 = vld [vmem:[#allocation10 + $0x190] sm:$0xff]
        %v412 = vld [vmem:[#allocation10 + $0x198] sm:$0xff]
        %v413 = vld [vmem:[#allocation10 + $0x1a0] sm:$0xff]
        %v414 = vld [vmem:[#allocation10 + $0x1a8] sm:$0xff]
        %v415 = vld [vmem:[#allocation10 + $0x1b0] sm:$0xff]
        %v416 = vld [vmem:[#allocation10 + $0x1b8] sm:$0xff]
        %v417 = vld [vmem:[#allocation10 + $0x1c0] sm:$0xff]
        %v418 = vld [vmem:[#allocation10 + $0x1c8] sm:$0xff]
        %v419 = vld [vmem:[#allocation10 + $0x1d0] sm:$0xff]
        %v420 = vld [vmem:[#allocation10 + $0x1d8] sm:$0xff]
        %v421 = vld [vmem:[#allocation10 + $0x1e0] sm:$0xff]
        %v422 = vld [vmem:[#allocation10 + $0x1e8] sm:$0xff]
        %v423 = vld [vmem:[#allocation10 + $0x1f0] sm:$0xff]
        %v424 = vld [vmem:[#allocation10 + $0x1f8] sm:$0xff]
        %v425 = vld [vmem:[#allocation10 + $0x200] sm:$0xff]
        %v426 = vld [vmem:[#allocation10 + $0x208] sm:$0xff]
        %v427 = vld [vmem:[#allocation10 + $0x210] sm:$0xff]
        %v428 = vld [vmem:[#allocation10 + $0x218] sm:$0xff]
        %v429 = vld [vmem:[#allocation10 + $0x220] sm:$0xff]
        %v430 = vld [vmem:[#allocation10 + $0x228] sm:$0xff]
        %v431 = vld [vmem:[#allocation10 + $0x230] sm:$0xff]
        %v432 = vld [vmem:[#allocation10 + $0x238] sm:$0xff]
        %v433 = vld [vmem:[#allocation10 + $0x240] sm:$0xff]
        %v434 = vld [vmem:[#allocation10 + $0x248] sm:$0xff]
        %v435 = vld [vmem:[#allocation10 + $0x250] sm:$0xff]
        %v436 = vld [vmem:[#allocation10 + $0x258] sm:$0xff]
        %v437 = vld [vmem:[#allocation10 + $0x260] sm:$0xff]
        %v438 = vld [vmem:[#allocation10 + $0x268] sm:$0xff]
        %v439 = vld [vmem:[#allocation10 + $0x270] sm:$0xff]
        %v440 = vld [vmem:[#allocation10 + $0x278] sm:$0xff]
        %v441 = vld [vmem:[#allocation10 + $0x280] sm:$0xff]
        %v442 = vld [vmem:[#allocation10 + $0x288] sm:$0xff]
        %v443 = vld [vmem:[#allocation10 + $0x290] sm:$0xff]
        %v444 = vld [vmem:[#allocation10 + $0x298] sm:$0xff]
        %v445 = vld [vmem:[#allocation10 + $0x2a0] sm:$0xff]
        %v446 = vld [vmem:[#allocation10 + $0x2a8] sm:$0xff]
        %v447 = vld [vmem:[#allocation10 + $0x2b0] sm:$0xff]
        %v448 = vld [vmem:[#allocation10 + $0x2b8] sm:$0xff]
        %v449 = vld [vmem:[#allocation10 + $0x2c0] sm:$0xff]
        %v450 = vld [vmem:[#allocation10 + $0x2c8] sm:$0xff]
        %v451 = vld [vmem:[#allocation10 + $0x2d0] sm:$0xff]
        %v452 = vld [vmem:[#allocation10 + $0x2d8] sm:$0xff]
        %v453 = vld [vmem:[#allocation10 + $0x2e0] sm:$0xff]
        %v454 = vld [vmem:[#allocation10 + $0x2e8] sm:$0xff]
        %v455 = vld [vmem:[#allocation10 + $0x2f0] sm:$0xff]
        %v456 = vld [vmem:[#allocation10 + $0x2f8] sm:$0xff]
        %v459 = vunpack.c.l.b16 %v359
        %v460 = vunpack.c.h.b16 %v359
        %v461 = vunpack.c.l.b16 %v360
        %v462 = vpack.c.b16 %v459, %v459
        %v463 = vpack.c.b16 %v460, %v460
        %v464 = vpack.c.b16 %v461, %v461
        %v564 = vunpack.c.l.b16 %v361
        %v565 = vunpack.c.h.b16 %v361
        %v566 = vunpack.c.l.b16 %v362
        %v567 = vunpack.c.h.b16 %v362
        %v568 = vunpack.c.l.b16 %v363
        %v569 = vunpack.c.h.b16 %v363
        %v570 = vunpack.c.l.b16 %v364
        %v571 = vunpack.c.h.b16 %v364
        %v572 = vunpack.c.l.b16 %v365
        %v573 = vunpack.c.h.b16 %v365
        %v574 = vunpack.c.l.b16 %v366
        %v575 = vunpack.c.h.b16 %v366
        %v576 = vunpack.c.l.b16 %v367
        %v577 = vunpack.c.h.b16 %v367
        %v578 = vunpack.c.l.b16 %v368
        %v579 = vunpack.c.h.b16 %v368
        %v580 = vunpack.c.l.b16 %v369
        %v581 = vunpack.c.h.b16 %v369
        %v582 = vunpack.c.l.b16 %v370
        %v583 = vunpack.c.h.b16 %v370
        %v584 = vunpack.c.l.b16 %v371
        %v585 = vunpack.c.h.b16 %v371
        %v586 = vunpack.c.l.b16 %v372
        %v587 = vunpack.c.h.b16 %v372
        %v588 = vunpack.c.l.b16 %v373
        %v589 = vunpack.c.h.b16 %v373
        %v590 = vunpack.c.l.b16 %v374
        %v591 = vunpack.c.h.b16 %v374
        %v592 = vunpack.c.l.b16 %v375
        %v593 = vunpack.c.h.b16 %v375
        %v594 = vunpack.c.l.b16 %v376
        %v595 = vunpack.c.h.b16 %v376
        %v596 = vunpack.c.l.b16 %v377
        %v597 = vunpack.c.h.b16 %v377
        %v598 = vunpack.c.l.b16 %v378
        %v599 = vunpack.c.h.b16 %v378
        %v600 = vunpack.c.l.b16 %v379
        %v601 = vunpack.c.h.b16 %v379
        %v602 = vunpack.c.l.b16 %v380
        %v603 = vunpack.c.h.b16 %v380
        %v604 = vunpack.c.l.b16 %v381
        %v605 = vunpack.c.h.b16 %v381
        %v606 = vunpack.c.l.b16 %v382
        %v607 = vunpack.c.h.b16 %v382
        %v608 = vunpack.c.l.b16 %v383
        %v609 = vunpack.c.h.b16 %v383
        %v610 = vunpack.c.l.b16 %v384
        %v611 = vunpack.c.h.b16 %v384
        %v612 = vunpack.c.l.b16 %v385
        %v613 = vunpack.c.h.b16 %v385
        %v614 = vunpack.c.l.b16 %v386
        %v615 = vunpack.c.h.b16 %v386
        %v616 = vunpack.c.l.b16 %v387
        %v617 = vunpack.c.h.b16 %v387
        %v618 = vunpack.c.l.b16 %v388
        %v619 = vunpack.c.h.b16 %v388
        %v620 = vunpack.c.l.b16 %v389
        %v621 = vunpack.c.h.b16 %v389
        %v622 = vunpack.c.l.b16 %v390
        %v623 = vunpack.c.h.b16 %v390
        %v624 = vunpack.c.l.b16 %v391
        %v625 = vunpack.c.h.b16 %v391
        %v626 = vunpack.c.l.b16 %v392
        %v627 = vunpack.c.h.b16 %v392
        %v628 = vunpack.c.l.b16 %v393
        %v629 = vunpack.c.h.b16 %v393
        %v630 = vunpack.c.l.b16 %v394
        %v631 = vunpack.c.h.b16 %v394
        %v632 = vunpack.c.l.b16 %v395
        %v633 = vunpack.c.h.b16 %v395
        %v634 = vunpack.c.l.b16 %v396
        %v635 = vunpack.c.h.b16 %v396
        %v636 = vunpack.c.l.b16 %v397
        %v637 = vunpack.c.h.b16 %v397
        %v638 = vunpack.c.l.b16 %v398
        %v639 = vunpack.c.h.b16 %v398
        %v640 = vunpack.c.l.b16 %v399
        %v641 = vunpack.c.h.b16 %v399
        %v642 = vunpack.c.l.b16 %v400
        %v643 = vunpack.c.h.b16 %v400
        %v644 = vunpack.c.l.b16 %v401
        %v645 = vunpack.c.h.b16 %v401
        %v646 = vunpack.c.l.b16 %v402
        %v647 = vunpack.c.h.b16 %v402
        %v648 = vunpack.c.l.b16 %v403
        %v649 = vunpack.c.h.b16 %v403
        %v650 = vunpack.c.l.b16 %v404
        %v651 = vunpack.c.h.b16 %v404
        %v652 = vunpack.c.l.b16 %v405
        %v653 = vunpack.c.h.b16 %v405
        %v654 = vunpack.c.l.b16 %v406
        %v655 = vunpack.c.h.b16 %v406
        %v656 = vunpack.c.l.b16 %v407
        %v657 = vunpack.c.h.b16 %v407
        %v658 = vunpack.c.l.b16 %v408
        %v659 = vunpack.c.h.b16 %v408
        %v660 = vunpack.c.l.b16 %v409
        %v661 = vunpack.c.h.b16 %v409
        %v662 = vunpack.c.l.b16 %v410
        %v663 = vunpack.c.h.b16 %v410
        %v664 = vunpack.c.l.b16 %v411
        %v665 = vunpack.c.h.b16 %v411
        %v666 = vunpack.c.l.b16 %v412
        %v667 = vunpack.c.h.b16 %v412
        %v668 = vunpack.c.l.b16 %v413
        %v669 = vunpack.c.h.b16 %v413
        %v670 = vunpack.c.l.b16 %v414
        %v671 = vunpack.c.h.b16 %v414
        %v672 = vunpack.c.l.b16 %v415
        %v673 = vunpack.c.h.b16 %v415
        %v674 = vunpack.c.l.b16 %v416
        %v675 = vunpack.c.h.b16 %v416
        %v676 = vunpack.c.l.b16 %v417
        %v677 = vunpack.c.h.b16 %v417
        %v678 = vunpack.c.l.b16 %v418
        %v679 = vunpack.c.h.b16 %v418
        %v680 = vunpack.c.l.b16 %v419
        %v681 = vunpack.c.h.b16 %v419
        %v682 = vunpack.c.l.b16 %v420
        %v683 = vunpack.c.h.b16 %v420
        %v684 = vunpack.c.l.b16 %v421
        %v685 = vunpack.c.h.b16 %v421
        %v686 = vunpack.c.l.b16 %v422
        %v687 = vunpack.c.h.b16 %v422
        %v688 = vunpack.c.l.b16 %v423
        %v689 = vunpack.c.h.b16 %v423
        %v690 = vunpack.c.l.b16 %v424
        %v691 = vunpack.c.h.b16 %v424
        %v692 = vunpack.c.l.b16 %v425
        %v693 = vunpack.c.h.b16 %v425
        %v694 = vunpack.c.l.b16 %v426
        %v695 = vunpack.c.h.b16 %v426
        %v696 = vunpack.c.l.b16 %v427
        %v697 = vunpack.c.h.b16 %v427
        %v698 = vunpack.c.l.b16 %v428
        %v699 = vunpack.c.h.b16 %v428
        %v700 = vunpack.c.l.b16 %v429
        %v701 = vunpack.c.h.b16 %v429
        %v702 = vunpack.c.l.b16 %v430
        %v703 = vunpack.c.h.b16 %v430
        %v704 = vunpack.c.l.b16 %v431
        %v705 = vunpack.c.h.b16 %v431
        %v706 = vunpack.c.l.b16 %v432
        %v707 = vunpack.c.h.b16 %v432
        %v708 = vunpack.c.l.b16 %v433
        %v709 = vunpack.c.h.b16 %v433
        %v710 = vunpack.c.l.b16 %v434
        %v711 = vunpack.c.h.b16 %v434
        %v712 = vunpack.c.l.b16 %v435
        %v713 = vunpack.c.h.b16 %v435
        %v714 = vunpack.c.l.b16 %v436
        %v715 = vunpack.c.h.b16 %v436
        %v716 = vunpack.c.l.b16 %v437
        %v717 = vunpack.c.h.b16 %v437
        %v718 = vunpack.c.l.b16 %v438
        %v719 = vunpack.c.h.b16 %v438
        %v720 = vunpack.c.l.b16 %v439
        %v721 = vunpack.c.h.b16 %v439
        %v722 = vunpack.c.l.b16 %v440
        %v723 = vunpack.c.h.b16 %v440
        %v724 = vunpack.c.l.b16 %v441
        %v725 = vunpack.c.h.b16 %v441
        %v726 = vunpack.c.l.b16 %v442
        %v727 = vunpack.c.h.b16 %v442
        %v728 = vunpack.c.l.b16 %v443
        %v729 = vunpack.c.h.b16 %v443
        %v730 = vunpack.c.l.b16 %v444
        %v731 = vunpack.c.h.b16 %v444
        %v732 = vunpack.c.l.b16 %v445
        %v733 = vunpack.c.h.b16 %v445
        %v734 = vunpack.c.l.b16 %v446
        %v735 = vunpack.c.h.b16 %v446
        %v736 = vunpack.c.l.b16 %v447
        %v737 = vunpack.c.h.b16 %v447
        %v738 = vunpack.c.l.b16 %v448
        %v739 = vunpack.c.h.b16 %v448
        %v740 = vunpack.c.l.b16 %v449
        %v741 = vunpack.c.h.b16 %v449
        %v742 = vunpack.c.l.b16 %v450
        %v743 = vunpack.c.h.b16 %v450
        %v744 = vunpack.c.l.b16 %v451
        %v745 = vunpack.c.h.b16 %v451
        %v746 = vunpack.c.l.b16 %v452
        %v747 = vunpack.c.h.b16 %v452
        %v748 = vunpack.c.l.b16 %v453
        %v749 = vunpack.c.h.b16 %v453
        %v750 = vunpack.c.l.b16 %v454
        %v751 = vunpack.c.h.b16 %v454
        %v752 = vunpack.c.l.b16 %v455
        %v753 = vunpack.c.h.b16 %v455
        %v754 = vunpack.c.l.b16 %v456
        %v755 = vunpack.c.h.b16 %v456
        %v756 = vpack.c.b16 %v568, %v564
        %v757 = vpack.c.b16 %v569, %v565
        %v758 = vpack.c.b16 %v570, %v566
        %v759 = vpack.c.b16 %v571, %v567
        %v760 = vpack.c.b16 %v576, %v572
        %v761 = vpack.c.b16 %v577, %v573
        %v762 = vpack.c.b16 %v578, %v574
        %v763 = vpack.c.b16 %v579, %v575
        %v764 = vpack.c.b16 %v584, %v580
        %v765 = vpack.c.b16 %v585, %v581
        %v766 = vpack.c.b16 %v586, %v582
        %v767 = vpack.c.b16 %v587, %v583
        %v768 = vpack.c.b16 %v592, %v588
        %v769 = vpack.c.b16 %v593, %v589
        %v770 = vpack.c.b16 %v594, %v590
        %v771 = vpack.c.b16 %v595, %v591
        %v772 = vpack.c.b16 %v600, %v596
        %v773 = vpack.c.b16 %v601, %v597
        %v774 = vpack.c.b16 %v602, %v598
        %v775 = vpack.c.b16 %v603, %v599
        %v776 = vpack.c.b16 %v608, %v604
        %v777 = vpack.c.b16 %v609, %v605
        %v778 = vpack.c.b16 %v610, %v606
        %v779 = vpack.c.b16 %v611, %v607
        %v780 = vpack.c.b16 %v616, %v612
        %v781 = vpack.c.b16 %v617, %v613
        %v782 = vpack.c.b16 %v618, %v614
        %v783 = vpack.c.b16 %v619, %v615
        %v784 = vpack.c.b16 %v624, %v620
        %v785 = vpack.c.b16 %v625, %v621
        %v786 = vpack.c.b16 %v626, %v622
        %v787 = vpack.c.b16 %v627, %v623
        %v788 = vpack.c.b16 %v632, %v628
        %v789 = vpack.c.b16 %v633, %v629
        %v790 = vpack.c.b16 %v634, %v630
        %v791 = vpack.c.b16 %v635, %v631
        %v792 = vpack.c.b16 %v640, %v636
        %v793 = vpack.c.b16 %v641, %v637
        %v794 = vpack.c.b16 %v642, %v638
        %v795 = vpack.c.b16 %v643, %v639
        %v796 = vpack.c.b16 %v648, %v644
        %v797 = vpack.c.b16 %v649, %v645
        %v798 = vpack.c.b16 %v650, %v646
        %v799 = vpack.c.b16 %v651, %v647
        %v800 = vpack.c.b16 %v656, %v652
        %v801 = vpack.c.b16 %v657, %v653
        %v802 = vpack.c.b16 %v658, %v654
        %v803 = vpack.c.b16 %v659, %v655
        %v804 = vpack.c.b16 %v664, %v660
        %v805 = vpack.c.b16 %v665, %v661
        %v806 = vpack.c.b16 %v666, %v662
        %v807 = vpack.c.b16 %v667, %v663
        %v808 = vpack.c.b16 %v672, %v668
        %v809 = vpack.c.b16 %v673, %v669
        %v810 = vpack.c.b16 %v674, %v670
        %v811 = vpack.c.b16 %v675, %v671
        %v812 = vpack.c.b16 %v680, %v676
        %v813 = vpack.c.b16 %v681, %v677
        %v814 = vpack.c.b16 %v682, %v678
        %v815 = vpack.c.b16 %v683, %v679
        %v816 = vpack.c.b16 %v688, %v684
        %v817 = vpack.c.b16 %v689, %v685
        %v818 = vpack.c.b16 %v690, %v686
        %v819 = vpack.c.b16 %v691, %v687
        %v820 = vpack.c.b16 %v696, %v692
        %v821 = vpack.c.b16 %v697, %v693
        %v822 = vpack.c.b16 %v698, %v694
        %v823 = vpack.c.b16 %v699, %v695
        %v824 = vpack.c.b16 %v704, %v700
        %v825 = vpack.c.b16 %v705, %v701
        %v826 = vpack.c.b16 %v706, %v702
        %v827 = vpack.c.b16 %v707, %v703
        %v828 = vpack.c.b16 %v712, %v708
        %v829 = vpack.c.b16 %v713, %v709
        %v830 = vpack.c.b16 %v714, %v710
        %v831 = vpack.c.b16 %v715, %v711
        %v832 = vpack.c.b16 %v720, %v716
        %v833 = vpack.c.b16 %v721, %v717
        %v834 = vpack.c.b16 %v722, %v718
        %v835 = vpack.c.b16 %v723, %v719
        %v836 = vpack.c.b16 %v728, %v724
        %v837 = vpack.c.b16 %v729, %v725
        %v838 = vpack.c.b16 %v730, %v726
        %v839 = vpack.c.b16 %v731, %v727
        %v840 = vpack.c.b16 %v736, %v732
        %v841 = vpack.c.b16 %v737, %v733
        %v842 = vpack.c.b16 %v738, %v734
        %v843 = vpack.c.b16 %v739, %v735
        %v844 = vpack.c.b16 %v744, %v740
        %v845 = vpack.c.b16 %v745, %v741
        %v846 = vpack.c.b16 %v746, %v742
        %v847 = vpack.c.b16 %v747, %v743
        %v848 = vpack.c.b16 %v752, %v748
        %v849 = vpack.c.b16 %v753, %v749
        %v850 = vpack.c.b16 %v754, %v750
        %v851 = vpack.c.b16 %v755, %v751
        %948 = vmatpush.bf16.msra.mxu0 %v784
        %949 = vmatpush.bf16.msra.mxu0 %v780
        %950 = vmatpush.bf16.msra.mxu0 %v776
        %951 = vmatpush.bf16.msra.mxu0 %v772
        %952 = vmatpush.bf16.msra.mxu0 %v768
        %953 = vmatpush.bf16.msra.mxu0 %v764
        %954 = vmatpush.bf16.msra.mxu0 %v760
        %955 = vmatpush.bf16.msra.mxu0 %v756
        %956 = vmatmul.bf16.gmra.mxu0 %v462
        %v957 = vpop.f32.mrf.mxu0
        %v958 = vadd.f32 0.0, %v957
        %v959 = vpop.f32.mrf.mxu0
        %960 = vdwg.mxu0
        %961 = vmatpush.bf16.msra.mxu0 %v816
        %962 = vmatpush.bf16.msra.mxu0 %v812
        %963 = vmatpush.bf16.msra.mxu0 %v808
        %964 = vmatpush.bf16.msra.mxu0 %v804
        %965 = vmatpush.bf16.msra.mxu0 %v800
        %966 = vmatpush.bf16.msra.mxu0 %v796
        %967 = vmatpush.bf16.msra.mxu0 %v792
        %968 = vmatpush.bf16.msra.mxu0 %v788
        %969 = vmatmul.bf16.gmra.mxu0 %v463
        %v970 = vpop.f32.mrf.mxu0
        %v971 = vadd.f32 %v958, %v970
        %v972 = vpop.f32.mrf.mxu0
        %973 = vdwg.mxu0
        %974 = vmatpush.bf16.msra.mxu0 %v848
        %975 = vmatpush.bf16.msra.mxu0 %v844
        %976 = vmatpush.bf16.msra.mxu0 %v840
        %977 = vmatpush.bf16.msra.mxu0 %v836
        %978 = vmatpush.bf16.msra.mxu0 %v832
        %979 = vmatpush.bf16.msra.mxu0 %v828
        %980 = vmatpush.bf16.msra.mxu0 %v824
        %981 = vmatpush.bf16.msra.mxu0 %v820
        %982 = vmatmul.bf16.gmra.mxu0 %v464
        %v983 = vpop.f32.mrf.mxu0
        %v984 = vadd.f32 %v971, %v983
        %v985 = vpop.f32.mrf.mxu0
        %986 = vdwg.mxu0
        %987 = vmatpush.bf16.msra.mxu0 %v785
        %988 = vmatpush.bf16.msra.mxu0 %v781
        %989 = vmatpush.bf16.msra.mxu0 %v777
        %990 = vmatpush.bf16.msra.mxu0 %v773
        %991 = vmatpush.bf16.msra.mxu0 %v769
        %992 = vmatpush.bf16.msra.mxu0 %v765
        %993 = vmatpush.bf16.msra.mxu0 %v761
        %994 = vmatpush.bf16.msra.mxu0 %v757
        %995 = vmatmul.bf16.gmra.mxu0 %v462
        %v996 = vpop.f32.mrf.mxu0
        %v997 = vadd.f32 0.0, %v996
        %v998 = vpop.f32.mrf.mxu0
        %999 = vdwg.mxu0
        %1000 = vmatpush.bf16.msra.mxu0 %v817
        %1001 = vmatpush.bf16.msra.mxu0 %v813
        %1002 = vmatpush.bf16.msra.mxu0 %v809
        %1003 = vmatpush.bf16.msra.mxu0 %v805
        %1004 = vmatpush.bf16.msra.mxu0 %v801
        %1005 = vmatpush.bf16.msra.mxu0 %v797
        %1006 = vmatpush.bf16.msra.mxu0 %v793
        %1007 = vmatpush.bf16.msra.mxu0 %v789
        %1008 = vmatmul.bf16.gmra.mxu0 %v463
        %v1009 = vpop.f32.mrf.mxu0
        %v1010 = vadd.f32 %v997, %v1009
        %v1011 = vpop.f32.mrf.mxu0
        %1012 = vdwg.mxu0
        %1013 = vmatpush.bf16.msra.mxu0 %v849
        %1014 = vmatpush.bf16.msra.mxu0 %v845
        %1015 = vmatpush.bf16.msra.mxu0 %v841
        %1016 = vmatpush.bf16.msra.mxu0 %v837
        %1017 = vmatpush.bf16.msra.mxu0 %v833
        %1018 = vmatpush.bf16.msra.mxu0 %v829
        %1019 = vmatpush.bf16.msra.mxu0 %v825
        %1020 = vmatpush.bf16.msra.mxu0 %v821
        %1021 = vmatmul.bf16.gmra.mxu0 %v464
        %v1022 = vpop.f32.mrf.mxu0
        %v1023 = vadd.f32 %v1010, %v1022
        %v1024 = vpop.f32.mrf.mxu0
        %1025 = vdwg.mxu0
        %1026 = vmatpush.bf16.msra.mxu0 %v786
        %1027 = vmatpush.bf16.msra.mxu0 %v782
        %1028 = vmatpush.bf16.msra.mxu0 %v778
        %1029 = vmatpush.bf16.msra.mxu0 %v774
        %1030 = vmatpush.bf16.msra.mxu0 %v770
        %1031 = vmatpush.bf16.msra.mxu0 %v766
        %1032 = vmatpush.bf16.msra.mxu0 %v762
        %1033 = vmatpush.bf16.msra.mxu0 %v758
        %1034 = vmatmul.bf16.gmra.mxu0 %v462
        %v1035 = vpop.f32.mrf.mxu0
        %v1036 = vadd.f32 0.0, %v1035
        %v1037 = vpop.f32.mrf.mxu0
        %1038 = vdwg.mxu0
        %1039 = vmatpush.bf16.msra.mxu0 %v818
        %1040 = vmatpush.bf16.msra.mxu0 %v814
        %1041 = vmatpush.bf16.msra.mxu0 %v810
        %1042 = vmatpush.bf16.msra.mxu0 %v806
        %1043 = vmatpush.bf16.msra.mxu0 %v802
        %1044 = vmatpush.bf16.msra.mxu0 %v798
        %1045 = vmatpush.bf16.msra.mxu0 %v794
        %1046 = vmatpush.bf16.msra.mxu0 %v790
        %1047 = vmatmul.bf16.gmra.mxu0 %v463
        %v1048 = vpop.f32.mrf.mxu0
        %v1049 = vadd.f32 %v1036, %v1048
        %v1050 = vpop.f32.mrf.mxu0
        %1051 = vdwg.mxu0
        %1052 = vmatpush.bf16.msra.mxu0 %v850
        %1053 = vmatpush.bf16.msra.mxu0 %v846
        %1054 = vmatpush.bf16.msra.mxu0 %v842
        %1055 = vmatpush.bf16.msra.mxu0 %v838
        %1056 = vmatpush.bf16.msra.mxu0 %v834
        %1057 = vmatpush.bf16.msra.mxu0 %v830
        %1058 = vmatpush.bf16.msra.mxu0 %v826
        %1059 = vmatpush.bf16.msra.mxu0 %v822
        %1060 = vmatmul.bf16.gmra.mxu0 %v464
        %v1061 = vpop.f32.mrf.mxu0
        %v1062 = vadd.f32 %v1049, %v1061
        %v1063 = vpop.f32.mrf.mxu0
        %1064 = vdwg.mxu0
        %1065 = vmatpush.bf16.msra.mxu0 %v787
        %1066 = vmatpush.bf16.msra.mxu0 %v783
        %1067 = vmatpush.bf16.msra.mxu0 %v779
        %1068 = vmatpush.bf16.msra.mxu0 %v775
        %1069 = vmatpush.bf16.msra.mxu0 %v771
        %1070 = vmatpush.bf16.msra.mxu0 %v767
        %1071 = vmatpush.bf16.msra.mxu0 %v763
        %1072 = vmatpush.bf16.msra.mxu0 %v759
        %1073 = vmatmul.bf16.gmra.mxu0 %v462
        %v1074 = vpop.f32.mrf.mxu0
        %v1075 = vadd.f32 0.0, %v1074
        %v1076 = vpop.f32.mrf.mxu0
        %1077 = vdwg.mxu0
        %1078 = vmatpush.bf16.msra.mxu0 %v819
        %1079 = vmatpush.bf16.msra.mxu0 %v815
        %1080 = vmatpush.bf16.msra.mxu0 %v811
        %1081 = vmatpush.bf16.msra.mxu0 %v807
        %1082 = vmatpush.bf16.msra.mxu0 %v803
        %1083 = vmatpush.bf16.msra.mxu0 %v799
        %1084 = vmatpush.bf16.msra.mxu0 %v795
        %1085 = vmatpush.bf16.msra.mxu0 %v791
        %1086 = vmatmul.bf16.gmra.mxu0 %v463
        %v1087 = vpop.f32.mrf.mxu0
        %v1088 = vadd.f32 %v1075, %v1087
        %v1089 = vpop.f32.mrf.mxu0
        %1090 = vdwg.mxu0
        %1091 = vmatpush.bf16.msra.mxu0 %v851
        %1092 = vmatpush.bf16.msra.mxu0 %v847
        %1093 = vmatpush.bf16.msra.mxu0 %v843
        %1094 = vmatpush.bf16.msra.mxu0 %v839
        %1095 = vmatpush.bf16.msra.mxu0 %v835
        %1096 = vmatpush.bf16.msra.mxu0 %v831
        %1097 = vmatpush.bf16.msra.mxu0 %v827
        %1098 = vmatpush.bf16.msra.mxu0 %v823
        %1099 = vmatmul.bf16.gmra.mxu0 %v464
        %v1100 = vpop.f32.mrf.mxu0
        %v1101 = vadd.f32 %v1088, %v1100
        %v1102 = vpop.f32.mrf.mxu0
        %1103 = vdwg.mxu0
        %v1104 = vxor.u32 %v984, 2147483648
        %v1105 = vmul.f32 %v1104, 1.442695
        %v1106 = vpow.pop %v1105
        %v1107 = vadd.f32 %v1106, 1.0
        %v1108 = vrcp.pop %v1107
        %v1109 = vmul.f32 %v1107, %v1108
        %v1110 = vsub.f32 1.0, %v1109
        %v1111 = vmul.f32 %v1108, %v1110
        %v1112 = vadd.f32 %v1108, %v1111
        %vm1113 = vweird.f32 %v1107
        %vm1114 = vweird.f32 %v1108
        %vm1115 = vmor %vm1113, %vm1114
        %v1116 = vsel %vm1115, %v1108, %v1112
        %v1117 = vand.u32 2147483647, %v1107
        %vm1118 = vcmp.eq.f32.partialorder %v1117, 8.507059e+37
        %v1119 = vand.u32 %v1107, 2147483648
        %v1120 = vor.u32 1.1754944e-38, %v1119
        %v1121 = vsel %vm1118, %v1120, %v1116
        %v1122 = vmul.f32 1.0, %v1121
        %v1123 = vxor.u32 %v1023, 2147483648
        %v1124 = vmul.f32 %v1123, 1.442695
        %v1125 = vpow.pop %v1124
        %v1126 = vadd.f32 %v1125, 1.0
        %v1127 = vrcp.pop %v1126
        %v1128 = vmul.f32 %v1126, %v1127
        %v1129 = vsub.f32 1.0, %v1128
        %v1130 = vmul.f32 %v1127, %v1129
        %v1131 = vadd.f32 %v1127, %v1130
        %vm1132 = vweird.f32 %v1126
        %vm1133 = vweird.f32 %v1127
        %vm1134 = vmor %vm1132, %vm1133
        %v1135 = vsel %vm1134, %v1127, %v1131
        %v1136 = vand.u32 2147483647, %v1126
        %vm1137 = vcmp.eq.f32.partialorder %v1136, 8.507059e+37
        %v1138 = vand.u32 %v1126, 2147483648
        %v1139 = vor.u32 1.1754944e-38, %v1138
        %v1140 = vsel %vm1137, %v1139, %v1135
        %v1141 = vmul.f32 1.0, %v1140
        %v1142 = vtanh.pop %v1062
        %v1143 = vxor.u32 %v1101, 2147483648
        %v1144 = vmul.f32 %v1143, 1.442695
        %v1145 = vpow.pop %v1144
        %v1146 = vadd.f32 %v1145, 1.0
        %v1147 = vrcp.pop %v1146
        %v1148 = vmul.f32 %v1146, %v1147
        %v1149 = vsub.f32 1.0, %v1148
        %v1150 = vmul.f32 %v1147, %v1149
        %v1151 = vadd.f32 %v1147, %v1150
        %vm1152 = vweird.f32 %v1146
        %vm1153 = vweird.f32 %v1147
        %vm1154 = vmor %vm1152, %vm1153
        %v1155 = vsel %vm1154, %v1147, %v1151
        %v1156 = vand.u32 2147483647, %v1146
        %vm1157 = vcmp.eq.f32.partialorder %v1156, 8.507059e+37
        %v1158 = vand.u32 %v1146, 2147483648
        %v1159 = vor.u32 1.1754944e-38, %v1158
        %v1160 = vsel %vm1157, %v1159, %v1155
        %v1161 = vmul.f32 1.0, %v1160
        %v1162 = vld [vmem:[#allocation4] sm:$0xff]
        %v1163 = vmul.f32 %v1141, %v1162
        %v1164 = vmul.f32 %v1122, %v1142
        %v1165 = vadd.f32 %v1163, %v1164
        %v1166 = vtanh.pop %v1165
        %v1167 = vmul.f32 %v1161, %v1166
        %1168 = vst [vmem:[#allocation4] sm:$0xff] %v1165
        %1169 = vst [vmem:[#allocation3] sm:$0xff] %v1167
        %v1170 = vpack.c.bf16 %v1167, %v1167
        %v1171 = vld [vmem:[%s4] sm:$0xff]
        %v1172 = vld [vmem:[%s4 + $0x8] sm:$0xff]
        %v1173 = vld [vmem:[%s4 + $0x10] sm:$0xff]
        %v1174 = vld [vmem:[%s4 + $0x18] sm:$0xff]
        %v1175 = vld [vmem:[%s4 + $0x20] sm:$0xff]
        %v1176 = vld [vmem:[%s4 + $0x28] sm:$0xff]
        %v1177 = vld [vmem:[%s4 + $0x30] sm:$0xff]
        %v1178 = vld [vmem:[%s4 + $0x38] sm:$0xff]
        %v1179 = vld [vmem:[%s4 + $0x40] sm:$0xff]
        %v1180 = vld [vmem:[%s4 + $0x48] sm:$0xff]
        %v1181 = vld [vmem:[%s4 + $0x50] sm:$0xff]
        %v1182 = vld [vmem:[%s4 + $0x58] sm:$0xff]
        %v1183 = vld [vmem:[%s4 + $0x60] sm:$0xff]
        %v1184 = vld [vmem:[%s4 + $0x68] sm:$0xff]
        %v1185 = vld [vmem:[%s4 + $0x70] sm:$0xff]
        %v1186 = vld [vmem:[%s4 + $0x78] sm:$0xff]
        %v1187 = vld [vmem:[%s5] sm:$0x3]
        %v1189 = vperm.slane %v1187, 0
        %v1190 = vperm.slane %v1187, 1
        %v1209 = vunpack.c.l.b16 %v1171
        %v1210 = vunpack.c.h.b16 %v1171
        %v1211 = vunpack.c.l.b16 %v1172
        %v1212 = vunpack.c.h.b16 %v1172
        %v1213 = vunpack.c.l.b16 %v1173
        %v1214 = vunpack.c.h.b16 %v1173
        %v1215 = vunpack.c.l.b16 %v1174
        %v1216 = vunpack.c.h.b16 %v1174
        %v1217 = vunpack.c.l.b16 %v1175
        %v1218 = vunpack.c.h.b16 %v1175
        %v1219 = vunpack.c.l.b16 %v1176
        %v1220 = vunpack.c.h.b16 %v1176
        %v1221 = vunpack.c.l.b16 %v1177
        %v1222 = vunpack.c.h.b16 %v1177
        %v1223 = vunpack.c.l.b16 %v1178
        %v1224 = vunpack.c.h.b16 %v1178
        %v1225 = vunpack.c.l.b16 %v1179
        %v1226 = vunpack.c.h.b16 %v1179
        %v1227 = vunpack.c.l.b16 %v1180
        %v1228 = vunpack.c.h.b16 %v1180
        %v1229 = vunpack.c.l.b16 %v1181
        %v1230 = vunpack.c.h.b16 %v1181
        %v1231 = vunpack.c.l.b16 %v1182
        %v1232 = vunpack.c.h.b16 %v1182
        %v1233 = vunpack.c.l.b16 %v1183
        %v1234 = vunpack.c.h.b16 %v1183
        %v1235 = vunpack.c.l.b16 %v1184
        %v1236 = vunpack.c.h.b16 %v1184
        %v1237 = vunpack.c.l.b16 %v1185
        %v1238 = vunpack.c.h.b16 %v1185
        %v1239 = vunpack.c.l.b16 %v1186
        %v1240 = vunpack.c.h.b16 %v1186
        %v1241 = vpack.c.b16 %v1211, %v1209
        %v1242 = vpack.c.b16 %v1212, %v1210
        %v1243 = vpack.c.b16 %v1215, %v1213
        %v1244 = vpack.c.b16 %v1216, %v1214
        %v1245 = vpack.c.b16 %v1219, %v1217
        %v1246 = vpack.c.b16 %v1220, %v1218
        %v1247 = vpack.c.b16 %v1223, %v1221
        %v1248 = vpack.c.b16 %v1224, %v1222
        %v1249 = vpack.c.b16 %v1227, %v1225
        %v1250 = vpack.c.b16 %v1228, %v1226
        %v1251 = vpack.c.b16 %v1231, %v1229
        %v1252 = vpack.c.b16 %v1232, %v1230
        %v1253 = vpack.c.b16 %v1235, %v1233
        %v1254 = vpack.c.b16 %v1236, %v1234
        %v1255 = vpack.c.b16 %v1239, %v1237
        %v1256 = vpack.c.b16 %v1240, %v1238
        %1273 = vmatpush.bf16.msra.mxu0 %v1255
        %1274 = vmatpush.bf16.msra.mxu0 %v1253
        %1275 = vmatpush.bf16.msra.mxu0 %v1251
        %1276 = vmatpush.bf16.msra.mxu0 %v1249
        %1277 = vmatpush.bf16.msra.mxu0 %v1247
        %1278 = vmatpush.bf16.msra.mxu0 %v1245
        %1279 = vmatpush.bf16.msra.mxu0 %v1243
        %1280 = vmatpush.bf16.msra.mxu0 %v1241
        %1281 = vmatmul.bf16.gmra.mxu0 %v1170
        %v1282 = vpop.f32.mrf.mxu0
        %v1283 = vadd.f32 %v1189, %v1282
        %v1284 = vpop.f32.mrf.mxu0
        %1285 = vdwg.mxu0
        %1286 = vmatpush.bf16.msra.mxu0 %v1256
        %1287 = vmatpush.bf16.msra.mxu0 %v1254
        %1288 = vmatpush.bf16.msra.mxu0 %v1252
        %1289 = vmatpush.bf16.msra.mxu0 %v1250
        %1290 = vmatpush.bf16.msra.mxu0 %v1248
        %1291 = vmatpush.bf16.msra.mxu0 %v1246
        %1292 = vmatpush.bf16.msra.mxu0 %v1244
        %1293 = vmatpush.bf16.msra.mxu0 %v1242
        %1294 = vmatmul.bf16.gmra.mxu0 %v1170
        %v1295 = vpop.f32.mrf.mxu0
        %v1296 = vadd.f32 %v1190, %v1295
        %v1297 = vpop.f32.mrf.mxu0
        %1298 = vdwg.mxu0
        %1299 = vst [vmem:[%s336] sm:$0xff] %v1283
        %1300 = vst [vmem:[%s336 + $0x8] sm:$0xff] %v1296
        %p1301 = scmp.eq.s32.totalorder %s26, 3
        // Predicated region
        $region61: #{language_decoder_forward_seq.1} parent=43 // pred_check
          %p1302 = pneg %p1301
        $region62: #{language_decoder_forward_seq.1} parent=43 // pred_check_branch
          %1304 = sbr.rel (%p1302) target = $region64
        $region63: #{language_decoder_forward_seq.1} parent=43 // pred_region
          %1305 = vst [vmem:[#allocation12] sm:$0xff] %v1167
          %1306 = vst [vmem:[#allocation14] sm:$0xff] %v1165
        $region64: #{language_decoder_forward_seq.1} parent=43 // pred_fallthru
          _
        %s1307 = sand.u32 %s165, 1
        %s1308 = scalar_lea.sflag [#allocation7], %s1307
        %s1309 = sand.u32 %s165, 1
        %s1310 = smul.addr %s1309, 16
        %s1311 = scalar_lea.vmem [#allocation11], %s1310
        // Predicated region
        $region65: #{language_decoder_forward_seq.1} parent=43 // pred_check
          %p1312 = pneg %p175
        $region66: #{language_decoder_forward_seq.1} parent=43 // pred_check_branch
          %1314 = sbr.rel (%p1312) target = $region68
        $region67: #{language_decoder_forward_seq.1} parent=43 // pred_region
          %1316 = vsyncadd %s1308, 0
          %s1317 = smul.addr %s26, 2
          %s1318 = smul.addr %s1317, 8
          %s1319 = scalar_lea.hbm %s6, %s1318
          %s1321 = sshll.u32 %s1311, 4
          %s1322 = int_to_ptr.vmem [resolvable:$true] %s1321
          %s1323 = sshll.u32 %s1319, 4
          %s1324 = int_to_ptr.hbm [resolvable:$true] %s1323
          %1326 = dma.vmem_to_hbm [thread:$0]  %s1322, 256, %s1324, %s1308
        $region68: #{language_decoder_forward_seq.1} parent=43 // pred_fallthru
          _
        // Predicated region
        $region69: #{language_decoder_forward_seq.1} parent=43 // pred_check
          %p1327 = pneg %p196
        $region70: #{language_decoder_forward_seq.1} parent=43 // pred_check_branch
          %1329 = sbr.rel (%p1327) target = $region72
        $region71: #{language_decoder_forward_seq.1} parent=43 // pred_region
          %1331 = vsyncadd [#allocation13], 0
          %s1333 = sshll.u32 [#allocation12], 4
          %s1334 = int_to_ptr.vmem [resolvable:$true] %s1333
          %s1335 = sshll.u32 %s7, 4
          %s1336 = int_to_ptr.hbm [resolvable:$true] %s1335
          %1338 = dma.vmem_to_hbm [thread:$0]  %s1334, 128, %s1336, [#allocation13]
        $region72: #{language_decoder_forward_seq.1} parent=43 // pred_fallthru
          _
        // Predicated region
        $region73: #{language_decoder_forward_seq.1} parent=43 // pred_check
          %p1339 = pneg %p217
        $region74: #{language_decoder_forward_seq.1} parent=43 // pred_check_branch
          %1341 = sbr.rel (%p1339) target = $region76
        $region75: #{language_decoder_forward_seq.1} parent=43 // pred_region
          %1343 = vsyncadd [#allocation13], 0
          %s1345 = sshll.u32 [#allocation14], 4
          %s1346 = int_to_ptr.vmem [resolvable:$true] %s1345
          %s1347 = sshll.u32 %s8, 4
          %s1348 = int_to_ptr.hbm [resolvable:$true] %s1347
          %1350 = dma.vmem_to_hbm [thread:$0]  %s1346, 128, %s1348, [#allocation13]
        $region76: #{language_decoder_forward_seq.1} parent=43 // pred_fallthru
          _
        // Predicated region
        $region77: #{language_decoder_forward_seq.1} parent=43 // pred_check
          %p1351 = pneg %p196
        $region78: #{language_decoder_forward_seq.1} parent=43 // pred_check_branch
          %1353 = sbr.rel (%p1351) target = $region80
        $region79: #{language_decoder_forward_seq.1} parent=43 // pred_region
          %1355 = dma.done [#allocation13], 128
        $region80: #{language_decoder_forward_seq.1} parent=43 // pred_fallthru
          _
        // Predicated region
        $region81: #{language_decoder_forward_seq.1} parent=43 // pred_check
          %p1356 = pneg %p217
        $region82: #{language_decoder_forward_seq.1} parent=43 // pred_check_branch
          %1358 = sbr.rel (%p1356) target = $region84
        $region83: #{language_decoder_forward_seq.1} parent=43 // pred_region
          %1360 = dma.done [#allocation13], 128
        $region84: #{language_decoder_forward_seq.1} parent=43 // pred_fallthru
          _
      $region44: #{language_decoder_forward_seq.1} parent=5 // pred_fallthru
        _
      %p1361 = scmp.le.s32.totalorder 2, %s21
      // Predicated region
      $region85: #{language_decoder_forward_seq.1} parent=5 // pred_check
        %p1362 = pneg %p1361
      $region86: #{language_decoder_forward_seq.1} parent=5 // pred_check_branch
        %1364 = sbr.rel (%p1362) target = $region88
      $region87: #{language_decoder_forward_seq.1} parent=5 // pred_region
        %s1365 = ssub.s32 %s21, 2
        // Predicated region
        $region89: #{language_decoder_forward_seq.1} parent=87 // pred_check
          %p1366 = pneg %p181
        $region90: #{language_decoder_forward_seq.1} parent=87 // pred_check_branch
          %1368 = sbr.rel (%p1366) target = $region92
        $region91: #{language_decoder_forward_seq.1} parent=87 // pred_region
          %s1369 = sand.u32 %s166, 1
          %s1370 = scalar_lea.sflag [#allocation7], %s1369
          %s1371 = sand.u32 %s166, 1
          %s1372 = smul.addr %s1371, 16
          %s1373 = scalar_lea.vmem [#allocation11], %s1372
          %1375 = dma.done %s1370, 256
        $region92: #{language_decoder_forward_seq.1} parent=87 // pred_fallthru
          _
      $region88: #{language_decoder_forward_seq.1} parent=5 // pred_fallthru
        _
    $region6: #{language_decoder_forward_seq.1} parent=1 // loop_footer
      %s25 = sadd.s32 1, %s21
    $region7: #{language_decoder_forward_seq.1} parent=1 // loop_footer_branch
      %20 = sbr.rel target = $region3
    $region8: #{language_decoder_forward_seq.1} parent=1 // loop_exit
      _
    %1376 = vsyncpa [#allocation6], 1
    %s1377 = scalar_lea.sflag [#allocation6], 1
    %1378 = vsyncpa %s1377, 1
    %1379 = vsyncpa [#allocation9], 1
    %1380 = vsyncpa [#allocation7], 1
    %s1381 = scalar_lea.sflag [#allocation7], 1
    %1382 = vsyncpa %s1381, 1
    %1383 = vsyncpa [#allocation13], 1

</llo_original>
